<compile_context>
chip_gen: v7x
topology: tpu7x:2x2x1
jax: 0.10.0
libtpu: 0.0.40
codegen_flags: <defaults>
</compile_context>

<pallas_src>
import math
import functools

import jax
import jax.numpy as jnp
from jax.experimental import pallas as pl
from jax.experimental.pallas import tpu as pltpu

LN_EPS = 1e-5   # torch.nn.LayerNorm default
LANE = 128


def _ceil_to(v, m=LANE):
    return ((v + m - 1) // m) * m


def _pad_last(a, target):
    pad = target - a.shape[-1]
    if pad == 0:
        return a
    cfg = [(0, 0)] * (a.ndim - 1) + [(0, pad)]
    return jnp.pad(a, cfg)


def _pad_axis(a, axis, target):
    pad = target - a.shape[axis]
    if pad == 0:
        return a
    cfg = [(0, 0)] * a.ndim
    cfg[axis] = (0, pad)
    return jnp.pad(a, cfg)


def _layernorm_masked(x, w, b, c_real):
    """LayerNorm over the first c_real lanes of a lane-padded (T, Cp) tile.

    Relies on padded lanes of x being zero; padded lanes of w/b are zero so the
    output's padded lanes stay zero.
    """
    lane = jax.lax.broadcasted_iota(jnp.int32, x.shape, dimension=x.ndim - 1)
    mask = (lane < c_real).astype(x.dtype)
    inv_c = 1.0 / c_real
    mu = jnp.sum(x, axis=-1, keepdims=True) * inv_c
    d = (x - mu) * mask
    var = jnp.sum(d * d, axis=-1, keepdims=True) * inv_c
    return d * jax.lax.rsqrt(var + LN_EPS) * w + b


def gpt_stack_kernel(x_ref,
                     ln1w_ref, ln1b_ref, wqkv_ref, bqkv_ref, wp_ref, bp_ref,
                     ln2w_ref, ln2b_ref, w1_ref, b1_ref, w2_ref, b2_ref,
                     lnfw_ref, lnfb_ref,
                     o_ref, *, n_head, c_real):
    """One transformer Block per grid step for one batch element.

    grid = (B, L); o_ref (constant index over L) is the VMEM-resident residual
    accumulator; ln_f is applied in place on the last layer step.
    """
    layer = pl.program_id(1)
    n_layer = pl.num_programs(1)

    @pl.when(layer == 0)
    def _init():
        o_ref[...] = x_ref[...]

    x = o_ref[0]                         # (T, Cp) f32; lanes [c_real:) are 0
    T, Cp = x.shape
    hd = c_real // n_head

    # ---------------- self-attention ----------------
    h = _layernorm_masked(x, ln1w_ref[0], ln1b_ref[0], c_real)
    # fused QKV projection as one plain 2-D matmul (scale already folded into Q)
    qkv = jnp.dot(h.astype(jnp.bfloat16), wqkv_ref[0],
                  preferred_element_type=jnp.float32) + bqkv_ref[0]   # (T, 3C)

    y = jnp.zeros((T, Cp), jnp.float32)
    for hh in range(n_head):             # unrolled tiny-head loop, no concats
        lo = hh * hd
        q_h = qkv[:, lo:lo + hd].astype(jnp.bfloat16)                 # (T, hd)
        k_h = qkv[:, c_real + lo:c_real + lo + hd].astype(jnp.bfloat16)
        v_h = qkv[:, 2 * c_real + lo:2 * c_real + lo + hd].astype(jnp.bfloat16)

        att = jax.lax.dot_general(q_h, k_h, (((1,), (1,)), ((), ())),
                                  preferred_element_type=jnp.float32)  # (T, T)
        att = jnp.exp(att - jnp.max(att, axis=-1, keepdims=True))
        att = att * pl.reciprocal(jnp.sum(att, axis=-1, keepdims=True),
                                  approx=True)
        y_h = jnp.dot(att.astype(jnp.bfloat16), v_h,
                      preferred_element_type=jnp.float32)              # (T, hd)
        # head-merge fused into the output projection:
        #   y @ Wp == sum_h y_h @ Wp[h*hd:(h+1)*hd, :]
        y = y + jnp.dot(y_h.astype(jnp.bfloat16), wp_ref[0, lo:lo + hd, :],
                        preferred_element_type=jnp.float32)            # (T, Cp)
    x = x + y + bp_ref[0]      # attn_drop / resid_drop are identity in eval

    # ---------------- MLP ----------------
    h2 = _layernorm_masked(x, ln2w_ref[0], ln2b_ref[0], c_real)
    m = jnp.dot(h2.astype(jnp.bfloat16), w1_ref[0],
                preferred_element_type=jnp.float32) + b1_ref[0]
    m = jnp.maximum(m, 0.0)
    m = jnp.dot(m.astype(jnp.bfloat16), w2_ref[0],
                preferred_element_type=jnp.float32) + b2_ref[0]
    x = x + m

    @pl.when(layer < n_layer - 1)
    def _store():
        o_ref[0] = x

    @pl.when(layer == n_layer - 1)
    def _final():
        o_ref[0] = _layernorm_masked(x, lnfw_ref[...], lnfb_ref[...],
                                     c_real).astype(o_ref.dtype)


def run_gpt_stack(x_tokens, stacked, lnf_w, lnf_b, n_head, n_embd):
    """x_tokens: (B, T, C) f32 tokens (pos_emb already added). Runs all layers + ln_f."""
    B, T, C = x_tokens.shape
    Cp = lnf_w.shape[-1]                           # lane-padded channel dim
    x_pad = _pad_last(x_tokens, Cp)                # zero-pad to lane-dense slab

    names = ('ln1_w', 'ln1_b', 'wqkv', 'bqkv', 'wp', 'bp',
             'ln2_w', 'ln2_b', 'w1', 'b1', 'w2', 'b2')
    ordered = [stacked[n] for n in names]
    L = ordered[0].shape[0]

    def layer_spec(a):
        rest = a.shape[1:]
        zeros = (0,) * len(rest)
        return pl.BlockSpec((1,) + rest, lambda b, l, z=zeros: (l,) + z)

    act_spec = pl.BlockSpec((1, T, Cp), lambda b, l: (b, 0, 0))

    # NOTE: layer streaming (grid over L) is kept even at tiny L; for large L it
    # is required, for small L the per-step overhead is negligible here.
    out = pl.pallas_call(
        functools.partial(gpt_stack_kernel, n_head=n_head, c_real=n_embd),
        out_shape=jax.ShapeDtypeStruct((B, T, Cp), x_tokens.dtype),
        grid=(B, L),
        in_specs=[act_spec]
                 + [layer_spec(a) for a in ordered]
                 + [pl.BlockSpec(lnf_w.shape, lambda b, l: (0, 0)),
                    pl.BlockSpec(lnf_b.shape, lambda b, l: (0, 0))],
        out_specs=act_spec,
        compiler_params=pltpu.CompilerParams(
            dimension_semantics=("parallel", "arbitrary"),  # batch || , layer seq
            vmem_limit_bytes=32 * 1024 * 1024),
    )(x_pad, *ordered, lnf_w, lnf_b)
    return out[:, :, :C]


def gpt_forward(image_tensor, gps, params, cfg):
    """Mirrors GPT.forward (eval mode)."""
    n_views, seq_len = cfg['n_views'], cfg['seq_len']
    n_embd = cfg['n_embd']
    va, ha = cfg['vert_anchors'], cfg['horz_anchors']

    bz = image_tensor.shape[0] // (n_views * seq_len)
    h, w = image_tensor.shape[2], image_tensor.shape[3]

    # NCHW -> tokens, same as torch view/permute/view
    x = image_tensor.reshape(bz, n_views * seq_len, -1, h, w)
    tok = jnp.transpose(x, (0, 1, 3, 4, 2)).reshape(bz, -1, n_embd)
    tok = jnp.concatenate([tok, gps], axis=1)

    x = params['pos_emb'] + tok            # self.drop(...) is identity in eval
    x = run_gpt_stack(x, params['stacked'], params['ln_f_w'], params['ln_f_b'],
                      cfg['n_head'], n_embd)

    Tv = n_views * seq_len * va * ha
    pos_tensor_out = x[:, Tv:, :]
    xi = x[:, :Tv, :].reshape(bz, n_views * seq_len, va, ha, n_embd)
    xi = jnp.transpose(xi, (0, 1, 4, 2, 3))
    image_tensor_out = xi.reshape(bz * n_views * seq_len, -1, h, w)
    return image_tensor_out, pos_tensor_out


def init_params(key, n_embd, n_head, block_exp, n_layer, total_tokens):
    """Matches GPT._init_weights: Linear ~ N(0, 0.02), biases 0, LayerNorm w=1 b=0.

    Weights are stored lane-padded (C -> Cp = ceil to 128) with zero padding and
    stacked along a leading layer axis; QKV is fused with the 1/sqrt(hd) scale
    folded into the Q columns.  NOTE: the real module initializes pos_emb to
    zeros; small random values are used here so the add is non-trivial.
    """
    C = n_embd
    Cp = _ceil_to(C)
    H = block_exp * n_embd
    Hp = _ceil_to(H)
    hd = C // n_head
    scale = 1.0 / math.sqrt(hd)

    keys = jax.random.split(key, 1 + n_layer)
    params = {'pos_emb': 0.02 * jax.random.normal(
        keys[0], (1, total_tokens, C), jnp.float32)}

    def lin(k, din, dout):
        # torch Linear weight is (out, in); stored transposed (in, out), same
        # N(0, 0.02) distribution.
        return 0.02 * jax.random.normal(k, (din, dout), jnp.float32)

    per = {n: [] for n in ('ln1_w', 'ln1_b', 'wqkv', 'bqkv', 'wp', 'bp',
                           'ln2_w', 'ln2_b', 'w1', 'b1', 'w2', 'b2')}
    for l in range(n_layer):
        ks = jax.random.split(keys[1 + l], 6)
        wq = lin(ks[0], C, C); wk = lin(ks[1], C, C); wv = lin(ks[2], C, C)
        bq = jnp.zeros((1, C), jnp.float32)
        bk = jnp.zeros((1, C), jnp.float32)
        bv = jnp.zeros((1, C), jnp.float32)
        wp = lin(ks[3], C, C); bp = jnp.zeros((1, C), jnp.float32)
        w1 = lin(ks[4], C, H); b1 = jnp.zeros((1, H), jnp.float32)
        w2 = lin(ks[5], H, C); b2 = jnp.zeros((1, C), jnp.float32)

        # Fold the attention scale into Q (weight and bias).
        wqkv = jnp.concatenate([wq * scale, wk, wv], axis=-1)       # (C, 3C)
        bqkv = jnp.concatenate([bq * scale, bk, bv], axis=-1)       # (1, 3C)

        per['ln1_w'].append(_pad_last(jnp.ones((1, C), jnp.float32), Cp))
        per['ln1_b'].append(_pad_last(jnp.zeros((1, C), jnp.float32), Cp))
        per['wqkv'].append(_pad_axis(wqkv, 0, Cp))                  # (Cp, 3C)
        per['bqkv'].append(bqkv)                                    # (1, 3C)
        per['wp'].append(_pad_last(wp, Cp))                         # (C, Cp)
        per['bp'].append(_pad_last(bp, Cp))                         # (1, Cp)
        per['ln2_w'].append(_pad_last(jnp.ones((1, C), jnp.float32), Cp))
        per['ln2_b'].append(_pad_last(jnp.zeros((1, C), jnp.float32), Cp))
        per['w1'].append(_pad_last(_pad_axis(w1, 0, Cp), Hp))       # (Cp, Hp)
        per['b1'].append(_pad_last(b1, Hp))                         # (1, Hp)
        per['w2'].append(_pad_last(_pad_axis(w2, 0, Hp), Cp))       # (Hp, Cp)
        per['b2'].append(_pad_last(b2, Cp))                         # (1, Cp)

    bf16 = ('wqkv', 'wp', 'w1', 'w2')
    params['stacked'] = {
        n: jnp.stack(per[n], axis=0).astype(
            jnp.bfloat16 if n in bf16 else jnp.float32)
        for n in per}
    params['ln_f_w'] = _pad_last(jnp.ones((1, C), jnp.float32), Cp)
    params['ln_f_b'] = _pad_last(jnp.zeros((1, C), jnp.float32), Cp)
    return params


if __name__ == "__main__":
    # small configuration consistent with the module
    cfg = dict(n_embd=32, n_head=4, block_exp=4, n_layer=2,
               vert_anchors=4, horz_anchors=4, seq_len=1,
               n_views=1, n_gps=1)
    bz = 2
    total_tokens = (cfg['n_views'] * cfg['seq_len'] * cfg['vert_anchors']
                    * cfg['horz_anchors'] + 5 * cfg['n_gps'])

    key = jax.random.PRNGKey(0)
    k_img, k_gps, k_par = jax.random.split(key, 3)

    # image_tensor: (bz * n_views * seq_len, n_embd, vert_anchors, horz_anchors)
    image_tensor = jax.random.normal(
        k_img,
        (bz * cfg['n_views'] * cfg['seq_len'], cfg['n_embd'],
         cfg['vert_anchors'], cfg['horz_anchors']),
        jnp.float32)
    # gps tokens already in embedding space: (bz, 5*n_gps, n_embd)
    gps = jax.random.normal(k_gps, (bz, 5 * cfg['n_gps'], cfg['n_embd']),
                            jnp.float32)

    params = init_params(k_par, cfg['n_embd'], cfg['n_head'], cfg['block_exp'],
                         cfg['n_layer'], total_tokens)

    fwd = jax.jit(lambda img, g, p: gpt_forward(img, g, p, cfg))
    img_out, pos_out = fwd(image_tensor, gps, params)
    jax.block_until_ready((img_out, pos_out))

    assert img_out.shape == (bz * cfg['n_views'] * cfg['seq_len'], cfg['n_embd'],
                             cfg['vert_anchors'], cfg['horz_anchors'])
    assert pos_out.shape == (bz, 5 * cfg['n_gps'], cfg['n_embd'])
    assert jnp.all(jnp.isfinite(img_out)) and jnp.all(jnp.isfinite(pos_out))
    print("KERNEL_OK")
</pallas_src>

<mosaic_0001>
module attributes {stable_mosaic.version = 11 : i64} {
  func.func @gpt_stack_kernel(%arg0: i32, %arg1: i32, %arg2: memref<1x21x128xf32, #tpu.memory_space<vmem>>, %arg3: memref<1x1x128xf32, #tpu.memory_space<vmem>>, %arg4: memref<1x1x128xf32, #tpu.memory_space<vmem>>, %arg5: memref<1x128x96xbf16, #tpu.memory_space<vmem>>, %arg6: memref<1x1x96xf32, #tpu.memory_space<vmem>>, %arg7: memref<1x32x128xbf16, #tpu.memory_space<vmem>>, %arg8: memref<1x1x128xf32, #tpu.memory_space<vmem>>, %arg9: memref<1x1x128xf32, #tpu.memory_space<vmem>>, %arg10: memref<1x1x128xf32, #tpu.memory_space<vmem>>, %arg11: memref<1x128x128xbf16, #tpu.memory_space<vmem>>, %arg12: memref<1x1x128xf32, #tpu.memory_space<vmem>>, %arg13: memref<1x128x128xbf16, #tpu.memory_space<vmem>>, %arg14: memref<1x1x128xf32, #tpu.memory_space<vmem>>, %arg15: memref<1x128xf32, #tpu.memory_space<vmem>>, %arg16: memref<1x128xf32, #tpu.memory_space<vmem>>, %arg17: memref<1x21x128xf32, #tpu.memory_space<vmem>>) attributes {dimension_semantics = [#tpu.dimension_semantics<parallel>, #tpu.dimension_semantics<arbitrary>], iteration_bounds = array<i64: 2, 2>, scalar_prefetch = 0 : i64, scratch_operands = 0 : i64, tpu.core_type = #tpu.core_type<tc>, window_params = [{transform_indices = @transform_0, window_bounds = array<i64: 1, 21, 128>}, {transform_indices = @transform_1, window_bounds = array<i64: 1, 1, 128>}, {transform_indices = @transform_2, window_bounds = array<i64: 1, 1, 128>}, {transform_indices = @transform_3, window_bounds = array<i64: 1, 128, 96>}, {transform_indices = @transform_4, window_bounds = array<i64: 1, 1, 96>}, {transform_indices = @transform_5, window_bounds = array<i64: 1, 32, 128>}, {transform_indices = @transform_6, window_bounds = array<i64: 1, 1, 128>}, {transform_indices = @transform_7, window_bounds = array<i64: 1, 1, 128>}, {transform_indices = @transform_8, window_bounds = array<i64: 1, 1, 128>}, {transform_indices = @transform_9, window_bounds = array<i64: 1, 128, 128>}, {transform_indices = @transform_10, window_bounds = array<i64: 1, 1, 128>}, {transform_indices = @transform_11, window_bounds = array<i64: 1, 128, 128>}, {transform_indices = @transform_12, window_bounds = array<i64: 1, 1, 128>}, {pipeline_mode = #tpu.pipeline_mode<synchronous>, transform_indices = @transform_13, window_bounds = array<i64: 1, 128>}, {pipeline_mode = #tpu.pipeline_mode<synchronous>, transform_indices = @transform_14, window_bounds = array<i64: 1, 128>}, {transform_indices = @transform_15, window_bounds = array<i64: 1, 21, 128>}]} {
    %c0_i32 = arith.constant 0 : i32
    %0 = arith.cmpi eq, %arg1, %c0_i32 : i32
    %1 = arith.extui %0 : i1 to i32
    %c0_i32_0 = arith.constant 0 : i32
    %2 = arith.cmpi ne, %1, %c0_i32_0 : i32
    scf.if %2 {
      %c0_83 = arith.constant 0 : index
      %c0_84 = arith.constant 0 : index
      %c0_85 = arith.constant 0 : index
      %200 = vector.load %arg2[%c0_83, %c0_84, %c0_85] : memref<1x21x128xf32, #tpu.memory_space<vmem>>, vector<1x21x128xf32>
      %c0_86 = arith.constant 0 : index
      %c0_87 = arith.constant 0 : index
      %c0_88 = arith.constant 0 : index
      %201 = vector.load %arg17[%c0_86, %c0_87, %c0_88] : memref<1x21x128xf32, #tpu.memory_space<vmem>>, vector<1x21x128xf32>
      tpu.vector_store %arg17[%c0_86, %c0_87, %c0_88], %200 {strides = array<i32>} : memref<1x21x128xf32, #tpu.memory_space<vmem>>, vector<1x21x128xf32>,
    } else {
    }
    %c0 = arith.constant 0 : index
    %c0_1 = arith.constant 0 : index
    %c0_2 = arith.constant 0 : index
    %3 = vector.load %arg17[%c0, %c0_1, %c0_2] : memref<1x21x128xf32, #tpu.memory_space<vmem>>, vector<1x21x128xf32>
    %4 = vector.shape_cast %3 : vector<1x21x128xf32> to vector<21x128xf32>
    %c0_3 = arith.constant 0 : index
    %c0_4 = arith.constant 0 : index
    %c0_5 = arith.constant 0 : index
    %5 = vector.load %arg3[%c0_3, %c0_4, %c0_5] : memref<1x1x128xf32, #tpu.memory_space<vmem>>, vector<1x1x128xf32>
    %6 = vector.shape_cast %5 : vector<1x1x128xf32> to vector<1x128xf32>
    %c0_6 = arith.constant 0 : index
    %c0_7 = arith.constant 0 : index
    %c0_8 = arith.constant 0 : index
    %7 = vector.load %arg4[%c0_6, %c0_7, %c0_8] : memref<1x1x128xf32, #tpu.memory_space<vmem>>, vector<1x1x128xf32>
    %8 = vector.shape_cast %7 : vector<1x1x128xf32> to vector<1x128xf32>
    %9 = tpu.iota {dimensions = array<i32: 1>} : vector<21x128xi32>
    %c32_i32 = arith.constant 32 : i32
    %10 = vector.broadcast %c32_i32 : i32 to vector<21x128xi32>
    %11 = arith.cmpi slt, %9, %10 : vector<21x128xi32>
    %12 = arith.extui %11 : vector<21x128xi1> to vector<21x128xi32>
    %13 = arith.sitofp %12 : vector<21x128xi32> to vector<21x128xf32>
    %cst = arith.constant dense<0.000000e+00> : vector<21xf32>
    %14 = vector.multi_reduction <add>, %4, %cst [1] : vector<21x128xf32> to vector<21xf32>
    %15 = vector.shape_cast %14 : vector<21xf32> to vector<21x1xf32>
    %cst_9 = arith.constant 3.125000e-02 : f32
    %16 = vector.broadcast %cst_9 : f32 to vector<21x1xf32>
    %17 = arith.mulf %15, %16 : vector<21x1xf32>
    %18 = vector.broadcast %17 : vector<21x1xf32> to vector<21x128xf32>
    %19 = arith.subf %4, %18 : vector<21x128xf32>
    %20 = arith.mulf %19, %13 : vector<21x128xf32>
    %21 = arith.mulf %20, %20 : vector<21x128xf32>
    %cst_10 = arith.constant dense<0.000000e+00> : vector<21xf32>
    %22 = vector.multi_reduction <add>, %21, %cst_10 [1] : vector<21x128xf32> to vector<21xf32>
    %23 = vector.shape_cast %22 : vector<21xf32> to vector<21x1xf32>
    %cst_11 = arith.constant 3.125000e-02 : f32
    %24 = vector.broadcast %cst_11 : f32 to vector<21x1xf32>
    %25 = arith.mulf %23, %24 : vector<21x1xf32>
    %cst_12 = arith.constant 9.99999974E-6 : f32
    %26 = vector.broadcast %cst_12 : f32 to vector<21x1xf32>
    %27 = arith.addf %25, %26 : vector<21x1xf32>
    %28 = math.rsqrt %27 : vector<21x1xf32>
    %29 = vector.broadcast %28 : vector<21x1xf32> to vector<21x128xf32>
    %30 = arith.mulf %20, %29 : vector<21x128xf32>
    %31 = vector.broadcast %6 : vector<1x128xf32> to vector<21x128xf32>
    %32 = arith.mulf %30, %31 : vector<21x128xf32>
    %33 = vector.broadcast %8 : vector<1x128xf32> to vector<21x128xf32>
    %34 = arith.addf %32, %33 : vector<21x128xf32>
    %35 = arith.truncf %34 : vector<21x128xf32> to vector<21x128xbf16>
    %c0_13 = arith.constant 0 : index
    %c0_14 = arith.constant 0 : index
    %c0_15 = arith.constant 0 : index
    %36 = vector.load %arg5[%c0_13, %c0_14, %c0_15] : memref<1x128x96xbf16, #tpu.memory_space<vmem>>, vector<1x128x96xbf16>
    %37 = vector.shape_cast %36 : vector<1x128x96xbf16> to vector<128x96xbf16>
    %cst_16 = arith.constant dense<0.000000e+00> : vector<21x96xf32>
    %38 = tpu.matmul %35, %37, %cst_16 {dimension_numbers = #tpu.dot_dimension_numbers<[1], [0], [0], [1], [0, 0, 1, 1], [], []>} : vector<21x128xbf16>, vector<128x96xbf16>, vector<21x96xf32> -> vector<21x96xf32>
    %c0_17 = arith.constant 0 : index
    %c0_18 = arith.constant 0 : index
    %c0_19 = arith.constant 0 : index
    %39 = vector.load %arg6[%c0_17, %c0_18, %c0_19] : memref<1x1x96xf32, #tpu.memory_space<vmem>>, vector<1x1x96xf32>
    %40 = vector.shape_cast %39 : vector<1x1x96xf32> to vector<1x96xf32>
    %41 = vector.broadcast %40 : vector<1x96xf32> to vector<21x96xf32>
    %42 = arith.addf %38, %41 : vector<21x96xf32>
    %cst_20 = arith.constant 0.000000e+00 : f32
    %43 = vector.broadcast %cst_20 : f32 to vector<21x128xf32>
    %44 = vector.extract_strided_slice %42 {offsets = [0, 0], sizes = [21, 8], strides = [1, 1]} : vector<21x96xf32> to vector<21x8xf32>
    %45 = arith.truncf %44 : vector<21x8xf32> to vector<21x8xbf16>
    %46 = vector.extract_strided_slice %42 {offsets = [0, 32], sizes = [21, 8], strides = [1, 1]} : vector<21x96xf32> to vector<21x8xf32>
    %47 = arith.truncf %46 : vector<21x8xf32> to vector<21x8xbf16>
    %48 = vector.extract_strided_slice %42 {offsets = [0, 64], sizes = [21, 8], strides = [1, 1]} : vector<21x96xf32> to vector<21x8xf32>
    %49 = arith.truncf %48 : vector<21x8xf32> to vector<21x8xbf16>
    %cst_21 = arith.constant dense<0.000000e+00> : vector<21x21xf32>
    %50 = tpu.matmul %45, %47, %cst_21 {dimension_numbers = #tpu.dot_dimension_numbers<[1], [1], [0], [0], [0, 0, 1, 0], [], []>} : vector<21x8xbf16>, vector<21x8xbf16>, vector<21x21xf32> -> vector<21x21xf32>
    %cst_22 = arith.constant dense<0xFF800000> : vector<21xf32>
    %51 = vector.multi_reduction <maximumf>, %50, %cst_22 [1] : vector<21x21xf32> to vector<21xf32>
    %52 = vector.shape_cast %51 : vector<21xf32> to vector<21x1xf32>
    %53 = vector.broadcast %52 : vector<21x1xf32> to vector<21x21xf32>
    %54 = arith.subf %50, %53 : vector<21x21xf32>
    %55 = math.exp %54 : vector<21x21xf32>
    %cst_23 = arith.constant dense<0.000000e+00> : vector<21xf32>
    %56 = vector.multi_reduction <add>, %55, %cst_23 [1] : vector<21x21xf32> to vector<21xf32>
    %57 = vector.shape_cast %56 : vector<21xf32> to vector<21x1xf32>
    %58 = tpu.reciprocal %57 {approx = true} : vector<21x1xf32> -> vector<21x1xf32>
    %59 = vector.broadcast %58 : vector<21x1xf32> to vector<21x21xf32>
    %60 = arith.mulf %55, %59 : vector<21x21xf32>
    %61 = arith.truncf %60 : vector<21x21xf32> to vector<21x21xbf16>
    %cst_24 = arith.constant dense<0.000000e+00> : vector<21x8xf32>
    %62 = tpu.matmul %61, %49, %cst_24 {dimension_numbers = #tpu.dot_dimension_numbers<[1], [0], [0], [1], [0, 0, 1, 1], [], []>} : vector<21x21xbf16>, vector<21x8xbf16>, vector<21x8xf32> -> vector<21x8xf32>
    %63 = arith.truncf %62 : vector<21x8xf32> to vector<21x8xbf16>
    %c0_25 = arith.constant 0 : index
    %c0_26 = arith.constant 0 : index
    %c0_27 = arith.constant 0 : index
    %64 = vector.load %arg7[%c0_25, %c0_26, %c0_27] : memref<1x32x128xbf16, #tpu.memory_space<vmem>>, vector<1x8x128xbf16>
    %65 = vector.shape_cast %64 : vector<1x8x128xbf16> to vector<8x128xbf16>
    %cst_28 = arith.constant dense<0.000000e+00> : vector<21x128xf32>
    %66 = tpu.matmul %63, %65, %cst_28 {dimension_numbers = #tpu.dot_dimension_numbers<[1], [0], [0], [1], [0, 0, 1, 1], [], []>} : vector<21x8xbf16>, vector<8x128xbf16>, vector<21x128xf32> -> vector<21x128xf32>
    %67 = arith.addf %43, %66 : vector<21x128xf32>
    %68 = vector.extract_strided_slice %42 {offsets = [0, 8], sizes = [21, 8], strides = [1, 1]} : vector<21x96xf32> to vector<21x8xf32>
    %69 = arith.truncf %68 : vector<21x8xf32> to vector<21x8xbf16>
    %70 = vector.extract_strided_slice %42 {offsets = [0, 40], sizes = [21, 8], strides = [1, 1]} : vector<21x96xf32> to vector<21x8xf32>
    %71 = arith.truncf %70 : vector<21x8xf32> to vector<21x8xbf16>
    %72 = vector.extract_strided_slice %42 {offsets = [0, 72], sizes = [21, 8], strides = [1, 1]} : vector<21x96xf32> to vector<21x8xf32>
    %73 = arith.truncf %72 : vector<21x8xf32> to vector<21x8xbf16>
    %cst_29 = arith.constant dense<0.000000e+00> : vector<21x21xf32>
    %74 = tpu.matmul %69, %71, %cst_29 {dimension_numbers = #tpu.dot_dimension_numbers<[1], [1], [0], [0], [0, 0, 1, 0], [], []>} : vector<21x8xbf16>, vector<21x8xbf16>, vector<21x21xf32> -> vector<21x21xf32>
    %cst_30 = arith.constant dense<0xFF800000> : vector<21xf32>
    %75 = vector.multi_reduction <maximumf>, %74, %cst_30 [1] : vector<21x21xf32> to vector<21xf32>
    %76 = vector.shape_cast %75 : vector<21xf32> to vector<21x1xf32>
    %77 = vector.broadcast %76 : vector<21x1xf32> to vector<21x21xf32>
    %78 = arith.subf %74, %77 : vector<21x21xf32>
    %79 = math.exp %78 : vector<21x21xf32>
    %cst_31 = arith.constant dense<0.000000e+00> : vector<21xf32>
    %80 = vector.multi_reduction <add>, %79, %cst_31 [1] : vector<21x21xf32> to vector<21xf32>
    %81 = vector.shape_cast %80 : vector<21xf32> to vector<21x1xf32>
    %82 = tpu.reciprocal %81 {approx = true} : vector<21x1xf32> -> vector<21x1xf32>
    %83 = vector.broadcast %82 : vector<21x1xf32> to vector<21x21xf32>
    %84 = arith.mulf %79, %83 : vector<21x21xf32>
    %85 = arith.truncf %84 : vector<21x21xf32> to vector<21x21xbf16>
    %cst_32 = arith.constant dense<0.000000e+00> : vector<21x8xf32>
    %86 = tpu.matmul %85, %73, %cst_32 {dimension_numbers = #tpu.dot_dimension_numbers<[1], [0], [0], [1], [0, 0, 1, 1], [], []>} : vector<21x21xbf16>, vector<21x8xbf16>, vector<21x8xf32> -> vector<21x8xf32>
    %87 = arith.truncf %86 : vector<21x8xf32> to vector<21x8xbf16>
    %c0_33 = arith.constant 0 : index
    %c8 = arith.constant 8 : index
    %c0_34 = arith.constant 0 : index
    %88 = vector.load %arg7[%c0_33, %c8, %c0_34] : memref<1x32x128xbf16, #tpu.memory_space<vmem>>, vector<1x8x128xbf16>
    %89 = vector.shape_cast %88 : vector<1x8x128xbf16> to vector<8x128xbf16>
    %cst_35 = arith.constant dense<0.000000e+00> : vector<21x128xf32>
    %90 = tpu.matmul %87, %89, %cst_35 {dimension_numbers = #tpu.dot_dimension_numbers<[1], [0], [0], [1], [0, 0, 1, 1], [], []>} : vector<21x8xbf16>, vector<8x128xbf16>, vector<21x128xf32> -> vector<21x128xf32>
    %91 = arith.addf %67, %90 : vector<21x128xf32>
    %92 = vector.extract_strided_slice %42 {offsets = [0, 16], sizes = [21, 8], strides = [1, 1]} : vector<21x96xf32> to vector<21x8xf32>
    %93 = arith.truncf %92 : vector<21x8xf32> to vector<21x8xbf16>
    %94 = vector.extract_strided_slice %42 {offsets = [0, 48], sizes = [21, 8], strides = [1, 1]} : vector<21x96xf32> to vector<21x8xf32>
    %95 = arith.truncf %94 : vector<21x8xf32> to vector<21x8xbf16>
    %96 = vector.extract_strided_slice %42 {offsets = [0, 80], sizes = [21, 8], strides = [1, 1]} : vector<21x96xf32> to vector<21x8xf32>
    %97 = arith.truncf %96 : vector<21x8xf32> to vector<21x8xbf16>
    %cst_36 = arith.constant dense<0.000000e+00> : vector<21x21xf32>
    %98 = tpu.matmul %93, %95, %cst_36 {dimension_numbers = #tpu.dot_dimension_numbers<[1], [1], [0], [0], [0, 0, 1, 0], [], []>} : vector<21x8xbf16>, vector<21x8xbf16>, vector<21x21xf32> -> vector<21x21xf32>
    %cst_37 = arith.constant dense<0xFF800000> : vector<21xf32>
    %99 = vector.multi_reduction <maximumf>, %98, %cst_37 [1] : vector<21x21xf32> to vector<21xf32>
    %100 = vector.shape_cast %99 : vector<21xf32> to vector<21x1xf32>
    %101 = vector.broadcast %100 : vector<21x1xf32> to vector<21x21xf32>
    %102 = arith.subf %98, %101 : vector<21x21xf32>
    %103 = math.exp %102 : vector<21x21xf32>
    %cst_38 = arith.constant dense<0.000000e+00> : vector<21xf32>
    %104 = vector.multi_reduction <add>, %103, %cst_38 [1] : vector<21x21xf32> to vector<21xf32>
    %105 = vector.shape_cast %104 : vector<21xf32> to vector<21x1xf32>
    %106 = tpu.reciprocal %105 {approx = true} : vector<21x1xf32> -> vector<21x1xf32>
    %107 = vector.broadcast %106 : vector<21x1xf32> to vector<21x21xf32>
    %108 = arith.mulf %103, %107 : vector<21x21xf32>
    %109 = arith.truncf %108 : vector<21x21xf32> to vector<21x21xbf16>
    %cst_39 = arith.constant dense<0.000000e+00> : vector<21x8xf32>
    %110 = tpu.matmul %109, %97, %cst_39 {dimension_numbers = #tpu.dot_dimension_numbers<[1], [0], [0], [1], [0, 0, 1, 1], [], []>} : vector<21x21xbf16>, vector<21x8xbf16>, vector<21x8xf32> -> vector<21x8xf32>
    %111 = arith.truncf %110 : vector<21x8xf32> to vector<21x8xbf16>
    %c0_40 = arith.constant 0 : index
    %c16 = arith.constant 16 : index
    %c0_41 = arith.constant 0 : index
    %112 = vector.load %arg7[%c0_40, %c16, %c0_41] : memref<1x32x128xbf16, #tpu.memory_space<vmem>>, vector<1x8x128xbf16>
    %113 = vector.shape_cast %112 : vector<1x8x128xbf16> to vector<8x128xbf16>
    %cst_42 = arith.constant dense<0.000000e+00> : vector<21x128xf32>
    %114 = tpu.matmul %111, %113, %cst_42 {dimension_numbers = #tpu.dot_dimension_numbers<[1], [0], [0], [1], [0, 0, 1, 1], [], []>} : vector<21x8xbf16>, vector<8x128xbf16>, vector<21x128xf32> -> vector<21x128xf32>
    %115 = arith.addf %91, %114 : vector<21x128xf32>
    %116 = vector.extract_strided_slice %42 {offsets = [0, 24], sizes = [21, 8], strides = [1, 1]} : vector<21x96xf32> to vector<21x8xf32>
    %117 = arith.truncf %116 : vector<21x8xf32> to vector<21x8xbf16>
    %118 = vector.extract_strided_slice %42 {offsets = [0, 56], sizes = [21, 8], strides = [1, 1]} : vector<21x96xf32> to vector<21x8xf32>
    %119 = arith.truncf %118 : vector<21x8xf32> to vector<21x8xbf16>
    %120 = vector.extract_strided_slice %42 {offsets = [0, 88], sizes = [21, 8], strides = [1, 1]} : vector<21x96xf32> to vector<21x8xf32>
    %121 = arith.truncf %120 : vector<21x8xf32> to vector<21x8xbf16>
    %cst_43 = arith.constant dense<0.000000e+00> : vector<21x21xf32>
    %122 = tpu.matmul %117, %119, %cst_43 {dimension_numbers = #tpu.dot_dimension_numbers<[1], [1], [0], [0], [0, 0, 1, 0], [], []>} : vector<21x8xbf16>, vector<21x8xbf16>, vector<21x21xf32> -> vector<21x21xf32>
    %cst_44 = arith.constant dense<0xFF800000> : vector<21xf32>
    %123 = vector.multi_reduction <maximumf>, %122, %cst_44 [1] : vector<21x21xf32> to vector<21xf32>
    %124 = vector.shape_cast %123 : vector<21xf32> to vector<21x1xf32>
    %125 = vector.broadcast %124 : vector<21x1xf32> to vector<21x21xf32>
    %126 = arith.subf %122, %125 : vector<21x21xf32>
    %127 = math.exp %126 : vector<21x21xf32>
    %cst_45 = arith.constant dense<0.000000e+00> : vector<21xf32>
    %128 = vector.multi_reduction <add>, %127, %cst_45 [1] : vector<21x21xf32> to vector<21xf32>
    %129 = vector.shape_cast %128 : vector<21xf32> to vector<21x1xf32>
    %130 = tpu.reciprocal %129 {approx = true} : vector<21x1xf32> -> vector<21x1xf32>
    %131 = vector.broadcast %130 : vector<21x1xf32> to vector<21x21xf32>
    %132 = arith.mulf %127, %131 : vector<21x21xf32>
    %133 = arith.truncf %132 : vector<21x21xf32> to vector<21x21xbf16>
    %cst_46 = arith.constant dense<0.000000e+00> : vector<21x8xf32>
    %134 = tpu.matmul %133, %121, %cst_46 {dimension_numbers = #tpu.dot_dimension_numbers<[1], [0], [0], [1], [0, 0, 1, 1], [], []>} : vector<21x21xbf16>, vector<21x8xbf16>, vector<21x8xf32> -> vector<21x8xf32>
    %135 = arith.truncf %134 : vector<21x8xf32> to vector<21x8xbf16>
    %c0_47 = arith.constant 0 : index
    %c24 = arith.constant 24 : index
    %c0_48 = arith.constant 0 : index
    %136 = vector.load %arg7[%c0_47, %c24, %c0_48] : memref<1x32x128xbf16, #tpu.memory_space<vmem>>, vector<1x8x128xbf16>
    %137 = vector.shape_cast %136 : vector<1x8x128xbf16> to vector<8x128xbf16>
    %cst_49 = arith.constant dense<0.000000e+00> : vector<21x128xf32>
    %138 = tpu.matmul %135, %137, %cst_49 {dimension_numbers = #tpu.dot_dimension_numbers<[1], [0], [0], [1], [0, 0, 1, 1], [], []>} : vector<21x8xbf16>, vector<8x128xbf16>, vector<21x128xf32> -> vector<21x128xf32>
    %139 = arith.addf %115, %138 : vector<21x128xf32>
    %140 = arith.addf %4, %139 : vector<21x128xf32>
    %c0_50 = arith.constant 0 : index
    %c0_51 = arith.constant 0 : index
    %c0_52 = arith.constant 0 : index
    %141 = vector.load %arg8[%c0_50, %c0_51, %c0_52] : memref<1x1x128xf32, #tpu.memory_space<vmem>>, vector<1x1x128xf32>
    %142 = vector.shape_cast %141 : vector<1x1x128xf32> to vector<1x128xf32>
    %143 = vector.broadcast %142 : vector<1x128xf32> to vector<21x128xf32>
    %144 = arith.addf %140, %143 : vector<21x128xf32>
    %c0_53 = arith.constant 0 : index
    %c0_54 = arith.constant 0 : index
    %c0_55 = arith.constant 0 : index
    %145 = vector.load %arg9[%c0_53, %c0_54, %c0_55] : memref<1x1x128xf32, #tpu.memory_space<vmem>>, vector<1x1x128xf32>
    %146 = vector.shape_cast %145 : vector<1x1x128xf32> to vector<1x128xf32>
    %c0_56 = arith.constant 0 : index
    %c0_57 = arith.constant 0 : index
    %c0_58 = arith.constant 0 : index
    %147 = vector.load %arg10[%c0_56, %c0_57, %c0_58] : memref<1x1x128xf32, #tpu.memory_space<vmem>>, vector<1x1x128xf32>
    %148 = vector.shape_cast %147 : vector<1x1x128xf32> to vector<1x128xf32>
    %149 = tpu.iota {dimensions = array<i32: 1>} : vector<21x128xi32>
    %c32_i32_59 = arith.constant 32 : i32
    %150 = vector.broadcast %c32_i32_59 : i32 to vector<21x128xi32>
    %151 = arith.cmpi slt, %149, %150 : vector<21x128xi32>
    %152 = arith.extui %151 : vector<21x128xi1> to vector<21x128xi32>
    %153 = arith.sitofp %152 : vector<21x128xi32> to vector<21x128xf32>
    %cst_60 = arith.constant dense<0.000000e+00> : vector<21xf32>
    %154 = vector.multi_reduction <add>, %144, %cst_60 [1] : vector<21x128xf32> to vector<21xf32>
    %155 = vector.shape_cast %154 : vector<21xf32> to vector<21x1xf32>
    %cst_61 = arith.constant 3.125000e-02 : f32
    %156 = vector.broadcast %cst_61 : f32 to vector<21x1xf32>
    %157 = arith.mulf %155, %156 : vector<21x1xf32>
    %158 = vector.broadcast %157 : vector<21x1xf32> to vector<21x128xf32>
    %159 = arith.subf %144, %158 : vector<21x128xf32>
    %160 = arith.mulf %159, %153 : vector<21x128xf32>
    %161 = arith.mulf %160, %160 : vector<21x128xf32>
    %cst_62 = arith.constant dense<0.000000e+00> : vector<21xf32>
    %162 = vector.multi_reduction <add>, %161, %cst_62 [1] : vector<21x128xf32> to vector<21xf32>
    %163 = vector.shape_cast %162 : vector<21xf32> to vector<21x1xf32>
    %cst_63 = arith.constant 3.125000e-02 : f32
    %164 = vector.broadcast %cst_63 : f32 to vector<21x1xf32>
    %165 = arith.mulf %163, %164 : vector<21x1xf32>
    %cst_64 = arith.constant 9.99999974E-6 : f32
    %166 = vector.broadcast %cst_64 : f32 to vector<21x1xf32>
    %167 = arith.addf %165, %166 : vector<21x1xf32>
    %168 = math.rsqrt %167 : vector<21x1xf32>
    %169 = vector.broadcast %168 : vector<21x1xf32> to vector<21x128xf32>
    %170 = arith.mulf %160, %169 : vector<21x128xf32>
    %171 = vector.broadcast %146 : vector<1x128xf32> to vector<21x128xf32>
    %172 = arith.mulf %170, %171 : vector<21x128xf32>
    %173 = vector.broadcast %148 : vector<1x128xf32> to vector<21x128xf32>
    %174 = arith.addf %172, %173 : vector<21x128xf32>
    %175 = arith.truncf %174 : vector<21x128xf32> to vector<21x128xbf16>
    %c0_65 = arith.constant 0 : index
    %c0_66 = arith.constant 0 : index
    %c0_67 = arith.constant 0 : index
    %176 = vector.load %arg11[%c0_65, %c0_66, %c0_67] : memref<1x128x128xbf16, #tpu.memory_space<vmem>>, vector<1x128x128xbf16>
    %177 = vector.shape_cast %176 : vector<1x128x128xbf16> to vector<128x128xbf16>
    %cst_68 = arith.constant dense<0.000000e+00> : vector<21x128xf32>
    %178 = tpu.matmul %175, %177, %cst_68 {dimension_numbers = #tpu.dot_dimension_numbers<[1], [0], [0], [1], [0, 0, 1, 1], [], []>} : vector<21x128xbf16>, vector<128x128xbf16>, vector<21x128xf32> -> vector<21x128xf32>
    %c0_69 = arith.constant 0 : index
    %c0_70 = arith.constant 0 : index
    %c0_71 = arith.constant 0 : index
    %179 = vector.load %arg12[%c0_69, %c0_70, %c0_71] : memref<1x1x128xf32, #tpu.memory_space<vmem>>, vector<1x1x128xf32>
    %180 = vector.shape_cast %179 : vector<1x1x128xf32> to vector<1x128xf32>
    %181 = vector.broadcast %180 : vector<1x128xf32> to vector<21x128xf32>
    %182 = arith.addf %178, %181 : vector<21x128xf32>
    %cst_72 = arith.constant 0.000000e+00 : f32
    %183 = vector.broadcast %cst_72 : f32 to vector<21x128xf32>
    %184 = arith.maximumf %182, %183 : vector<21x128xf32>
    %185 = arith.truncf %184 : vector<21x128xf32> to vector<21x128xbf16>
    %c0_73 = arith.constant 0 : index
    %c0_74 = arith.constant 0 : index
    %c0_75 = arith.constant 0 : index
    %186 = vector.load %arg13[%c0_73, %c0_74, %c0_75] : memref<1x128x128xbf16, #tpu.memory_space<vmem>>, vector<1x128x128xbf16>
    %187 = vector.shape_cast %186 : vector<1x128x128xbf16> to vector<128x128xbf16>
    %cst_76 = arith.constant dense<0.000000e+00> : vector<21x128xf32>
    %188 = tpu.matmul %185, %187, %cst_76 {dimension_numbers = #tpu.dot_dimension_numbers<[1], [0], [0], [1], [0, 0, 1, 1], [], []>} : vector<21x128xbf16>, vector<128x128xbf16>, vector<21x128xf32> -> vector<21x128xf32>
    %c0_77 = arith.constant 0 : index
    %c0_78 = arith.constant 0 : index
    %c0_79 = arith.constant 0 : index
    %189 = vector.load %arg14[%c0_77, %c0_78, %c0_79] : memref<1x1x128xf32, #tpu.memory_space<vmem>>, vector<1x1x128xf32>
    %190 = vector.shape_cast %189 : vector<1x1x128xf32> to vector<1x128xf32>
    %191 = vector.broadcast %190 : vector<1x128xf32> to vector<21x128xf32>
    %192 = arith.addf %188, %191 : vector<21x128xf32>
    %193 = arith.addf %144, %192 : vector<21x128xf32>
    %c1_i32 = arith.constant 1 : i32
    %194 = arith.cmpi slt, %arg1, %c1_i32 : i32
    %195 = arith.extui %194 : i1 to i32
    %c0_i32_80 = arith.constant 0 : i32
    %196 = arith.cmpi ne, %195, %c0_i32_80 : i32
    scf.if %196 {
      %c0_83 = arith.constant 0 : index
      %c0_84 = arith.constant 0 : index
      %c0_85 = arith.constant 0 : index
      %200 = vector.load %arg17[%c0_83, %c0_84, %c0_85] : memref<1x21x128xf32, #tpu.memory_space<vmem>>, vector<1x21x128xf32>
      %201 = vector.shape_cast %200 : vector<1x21x128xf32> to vector<21x128xf32>
      %202 = vector.shape_cast %193 : vector<21x128xf32> to vector<1x21x128xf32>
      tpu.vector_store %arg17[%c0_83, %c0_84, %c0_85], %202 {strides = array<i32>} : memref<1x21x128xf32, #tpu.memory_space<vmem>>, vector<1x21x128xf32>,
    } else {
    }
    %c1_i32_81 = arith.constant 1 : i32
    %197 = arith.cmpi eq, %arg1, %c1_i32_81 : i32
    %198 = arith.extui %197 : i1 to i32
    %c0_i32_82 = arith.constant 0 : i32
    %199 = arith.cmpi ne, %198, %c0_i32_82 : i32
    scf.if %199 {
      %c0_83 = arith.constant 0 : index
      %c0_84 = arith.constant 0 : index
      %200 = vector.load %arg15[%c0_83, %c0_84] : memref<1x128xf32, #tpu.memory_space<vmem>>, vector<1x128xf32>
      %c0_85 = arith.constant 0 : index
      %c0_86 = arith.constant 0 : index
      %201 = vector.load %arg16[%c0_85, %c0_86] : memref<1x128xf32, #tpu.memory_space<vmem>>, vector<1x128xf32>
      %202 = tpu.iota {dimensions = array<i32: 1>} : vector<21x128xi32>
      %c32_i32_87 = arith.constant 32 : i32
      %203 = vector.broadcast %c32_i32_87 : i32 to vector<21x128xi32>
      %204 = arith.cmpi slt, %202, %203 : vector<21x128xi32>
      %205 = arith.extui %204 : vector<21x128xi1> to vector<21x128xi32>
      %206 = arith.sitofp %205 : vector<21x128xi32> to vector<21x128xf32>
      %cst_88 = arith.constant dense<0.000000e+00> : vector<21xf32>
      %207 = vector.multi_reduction <add>, %193, %cst_88 [1] : vector<21x128xf32> to vector<21xf32>
      %208 = vector.shape_cast %207 : vector<21xf32> to vector<21x1xf32>
      %cst_89 = arith.constant 3.125000e-02 : f32
      %209 = vector.broadcast %cst_89 : f32 to vector<21x1xf32>
      %210 = arith.mulf %208, %209 : vector<21x1xf32>
      %211 = vector.broadcast %210 : vector<21x1xf32> to vector<21x128xf32>
      %212 = arith.subf %193, %211 : vector<21x128xf32>
      %213 = arith.mulf %212, %206 : vector<21x128xf32>
      %214 = arith.mulf %213, %213 : vector<21x128xf32>
      %cst_90 = arith.constant dense<0.000000e+00> : vector<21xf32>
      %215 = vector.multi_reduction <add>, %214, %cst_90 [1] : vector<21x128xf32> to vector<21xf32>
      %216 = vector.shape_cast %215 : vector<21xf32> to vector<21x1xf32>
      %cst_91 = arith.constant 3.125000e-02 : f32
      %217 = vector.broadcast %cst_91 : f32 to vector<21x1xf32>
      %218 = arith.mulf %216, %217 : vector<21x1xf32>
      %cst_92 = arith.constant 9.99999974E-6 : f32
      %219 = vector.broadcast %cst_92 : f32 to vector<21x1xf32>
      %220 = arith.addf %218, %219 : vector<21x1xf32>
      %221 = math.rsqrt %220 : vector<21x1xf32>
      %222 = vector.broadcast %221 : vector<21x1xf32> to vector<21x128xf32>
      %223 = arith.mulf %213, %222 : vector<21x128xf32>
      %224 = vector.broadcast %200 : vector<1x128xf32> to vector<21x128xf32>
      %225 = arith.mulf %223, %224 : vector<21x128xf32>
      %226 = vector.broadcast %201 : vector<1x128xf32> to vector<21x128xf32>
      %227 = arith.addf %225, %226 : vector<21x128xf32>
      %c0_93 = arith.constant 0 : index
      %c0_94 = arith.constant 0 : index
      %c0_95 = arith.constant 0 : index
      %228 = vector.load %arg17[%c0_93, %c0_94, %c0_95] : memref<1x21x128xf32, #tpu.memory_space<vmem>>, vector<1x21x128xf32>
      %229 = vector.shape_cast %228 : vector<1x21x128xf32> to vector<21x128xf32>
      %230 = vector.shape_cast %227 : vector<21x128xf32> to vector<1x21x128xf32>
      tpu.vector_store %arg17[%c0_93, %c0_94, %c0_95], %230 {strides = array<i32>} : memref<1x21x128xf32, #tpu.memory_space<vmem>>, vector<1x21x128xf32>,
    } else {
    }
    return
  }
  func.func @transform_0(%arg0: i32, %arg1: i32) -> (i32, i32, i32) {
    %c0_i32 = arith.constant 0 : i32
    %c0_i32_0 = arith.constant 0 : i32
    %c0_i32_1 = arith.constant 0 : i32
    return %arg0, %c0_i32, %c0_i32_0 : i32, i32, i32
  }
  func.func @transform_1(%arg0: i32, %arg1: i32) -> (i32, i32, i32) {
    %c0_i32 = arith.constant 0 : i32
    %c0_i32_0 = arith.constant 0 : i32
    %c0_i32_1 = arith.constant 0 : i32
    return %arg1, %c0_i32, %c0_i32_0 : i32, i32, i32
  }
  func.func @transform_2(%arg0: i32, %arg1: i32) -> (i32, i32, i32) {
    %c0_i32 = arith.constant 0 : i32
    %c0_i32_0 = arith.constant 0 : i32
    %c0_i32_1 = arith.constant 0 : i32
    return %arg1, %c0_i32, %c0_i32_0 : i32, i32, i32
  }
  func.func @transform_3(%arg0: i32, %arg1: i32) -> (i32, i32, i32) {
    %c0_i32 = arith.constant 0 : i32
    %c0_i32_0 = arith.constant 0 : i32
    %c0_i32_1 = arith.constant 0 : i32
    return %arg1, %c0_i32, %c0_i32_0 : i32, i32, i32
  }
  func.func @transform_4(%arg0: i32, %arg1: i32) -> (i32, i32, i32) {
    %c0_i32 = arith.constant 0 : i32
    %c0_i32_0 = arith.constant 0 : i32
    %c0_i32_1 = arith.constant 0 : i32
    return %arg1, %c0_i32, %c0_i32_0 : i32, i32, i32
  }
  func.func @transform_5(%arg0: i32, %arg1: i32) -> (i32, i32, i32) {
    %c0_i32 = arith.constant 0 : i32
    %c0_i32_0 = arith.constant 0 : i32
    %c0_i32_1 = arith.constant 0 : i32
    return %arg1, %c0_i32, %c0_i32_0 : i32, i32, i32
  }
  func.func @transform_6(%arg0: i32, %arg1: i32) -> (i32, i32, i32) {
    %c0_i32 = arith.constant 0 : i32
    %c0_i32_0 = arith.constant 0 : i32
    %c0_i32_1 = arith.constant 0 : i32
    return %arg1, %c0_i32, %c0_i32_0 : i32, i32, i32
  }
  func.func @transform_7(%arg0: i32, %arg1: i32) -> (i32, i32, i32) {
    %c0_i32 = arith.constant 0 : i32
    %c0_i32_0 = arith.constant 0 : i32
    %c0_i32_1 = arith.constant 0 : i32
    return %arg1, %c0_i32, %c0_i32_0 : i32, i32, i32
  }
  func.func @transform_8(%arg0: i32, %arg1: i32) -> (i32, i32, i32) {
    %c0_i32 = arith.constant 0 : i32
    %c0_i32_0 = arith.constant 0 : i32
    %c0_i32_1 = arith.constant 0 : i32
    return %arg1, %c0_i32, %c0_i32_0 : i32, i32, i32
  }
  func.func @transform_9(%arg0: i32, %arg1: i32) -> (i32, i32, i32) {
    %c0_i32 = arith.constant 0 : i32
    %c0_i32_0 = arith.constant 0 : i32
    %c0_i32_1 = arith.constant 0 : i32
    return %arg1, %c0_i32, %c0_i32_0 : i32, i32, i32
  }
  func.func @transform_10(%arg0: i32, %arg1: i32) -> (i32, i32, i32) {
    %c0_i32 = arith.constant 0 : i32
    %c0_i32_0 = arith.constant 0 : i32
    %c0_i32_1 = arith.constant 0 : i32
    return %arg1, %c0_i32, %c0_i32_0 : i32, i32, i32
  }
  func.func @transform_11(%arg0: i32, %arg1: i32) -> (i32, i32, i32) {
    %c0_i32 = arith.constant 0 : i32
    %c0_i32_0 = arith.constant 0 : i32
    %c0_i32_1 = arith.constant 0 : i32
    return %arg1, %c0_i32, %c0_i32_0 : i32, i32, i32
  }
  func.func @transform_12(%arg0: i32, %arg1: i32) -> (i32, i32, i32) {
    %c0_i32 = arith.constant 0 : i32
    %c0_i32_0 = arith.constant 0 : i32
    %c0_i32_1 = arith.constant 0 : i32
    return %arg1, %c0_i32, %c0_i32_0 : i32, i32, i32
  }
  func.func @transform_13(%arg0: i32, %arg1: i32) -> (i32, i32) {
    %c0_i32 = arith.constant 0 : i32
    %c0_i32_0 = arith.constant 0 : i32
    %c0_i32_1 = arith.constant 0 : i32
    return %c0_i32, %c0_i32_0 : i32, i32
  }
  func.func @transform_14(%arg0: i32, %arg1: i32) -> (i32, i32) {
    %c0_i32 = arith.constant 0 : i32
    %c0_i32_0 = arith.constant 0 : i32
    %c0_i32_1 = arith.constant 0 : i32
    return %c0_i32, %c0_i32_0 : i32, i32
  }
  func.func @transform_15(%arg0: i32, %arg1: i32) -> (i32, i32, i32) {
    %c0_i32 = arith.constant 0 : i32
    %c0_i32_0 = arith.constant 0 : i32
    %c0_i32_1 = arith.constant 0 : i32
    return %arg0, %c0_i32, %c0_i32_0 : i32, i32, i32
  }
}

</mosaic_0001>

<llo_original>
// kernel: _lambda_.1
$region0: #{_lambda_.1}
  #allocation0 [shape = 'u32[]', space=smem, size = 0x4, offset = 0x4, fixed_abs, tag = 'smem constant byte address 0x4 - core index']
  #allocation1 [shape = 'u32[144,128]{1,0:T(1,128)}', space=vmem, size = 0x12000, scoped, tag = 'internal scratch']
  %s0 = inlined_call_operand.vmem [shape: f32[2,21,128], index: 0, kind: input, shape index: {}]
  %s1 = inlined_call_operand.vmem [shape: f32[2,1,128], index: 1, kind: input, shape index: {}]
  %s2 = inlined_call_operand.vmem [shape: f32[2,1,128], index: 2, kind: input, shape index: {}]
  %s3 = inlined_call_operand.vmem [shape: bf16[2,128,96], index: 3, kind: input, shape index: {}]
  %s4 = inlined_call_operand.vmem [shape: f32[2,1,96], index: 4, kind: input, shape index: {}]
  %s5 = inlined_call_operand.vmem [shape: bf16[2,32,128], index: 5, kind: input, shape index: {}]
  %s6 = inlined_call_operand.vmem [shape: f32[2,1,128], index: 6, kind: input, shape index: {}]
  %s7 = inlined_call_operand.vmem [shape: f32[2,1,128], index: 7, kind: input, shape index: {}]
  %s8 = inlined_call_operand.vmem [shape: f32[2,1,128], index: 8, kind: input, shape index: {}]
  %s9 = inlined_call_operand.vmem [shape: bf16[2,128,128], index: 9, kind: input, shape index: {}]
  %s10 = inlined_call_operand.vmem [shape: f32[2,1,128], index: 10, kind: input, shape index: {}]
  %s11 = inlined_call_operand.vmem [shape: bf16[2,128,128], index: 11, kind: input, shape index: {}]
  %s12 = inlined_call_operand.vmem [shape: f32[2,1,128], index: 12, kind: input, shape index: {}]
  %s13 = inlined_call_operand.vmem [shape: f32[1,128], index: 13, kind: input, shape index: {}]
  %s14 = inlined_call_operand.vmem [shape: f32[1,128], index: 14, kind: input, shape index: {}]
  %s15 = inlined_call_operand.vmem [shape: f32[2,21,128], index: 15, kind: output, shape index: {}]
  %s16 = sld [smem:[#allocation0]]
  $region105: #{_lambda_.1} parent=0
    _
  %s18 = ssub.s32 1, %s16
  %s19 = scalar_select 0, %s18, %s16
  loop: start=0, step=1, limit=6
  $region2: #{_lambda_.1} parent=0 // loop_pre_header
    _
  $region3: #{_lambda_.1} parent=0 // loop_header
    %s21 = sphi 0, %s25
    %p22 = scmp.ge.s32.totalorder %s21, 6
    %s28 = sphi 0, %s40
    %s29 = sphi 0, %s36
    %s30 = sphi 0, %s28
    %s31 = sphi 0, %s29
    %s32 = sphi 0, %s30
    %s33 = sphi 0, %s31
    %s43 = sphi 0, %s45
    %s46 = sphi 0, %s43
    %s47 = sphi 0, %s46
    %s63 = sphi 0, %s47
    %s69 = sphi 0, %s71
    %s72 = sphi 0, %s69
    %s73 = sphi 0, %s72
    %s89 = sphi 0, %s73
    %s95 = sphi 0, %s97
    %s98 = sphi 0, %s95
    %s99 = sphi 0, %s98
    %s115 = sphi 0, %s99
    %s121 = sphi 0, %s123
    %s124 = sphi 0, %s121
    %s125 = sphi 0, %s124
    %s141 = sphi 0, %s125
    %s147 = sphi 0, %s149
    %s150 = sphi 0, %s147
    %s151 = sphi 0, %s150
    %s167 = sphi 0, %s151
    %s173 = sphi 0, %s175
    %s176 = sphi 0, %s173
    %s177 = sphi 0, %s176
    %s193 = sphi 0, %s177
    %s199 = sphi 0, %s201
    %s202 = sphi 0, %s199
    %s203 = sphi 0, %s202
    %s219 = sphi 0, %s203
    %s225 = sphi 0, %s227
    %s228 = sphi 0, %s225
    %s229 = sphi 0, %s228
    %s245 = sphi 0, %s229
    %s251 = sphi 0, %s253
    %s254 = sphi 0, %s251
    %s255 = sphi 0, %s254
    %s271 = sphi 0, %s255
    %s277 = sphi 0, %s279
    %s280 = sphi 0, %s277
    %s281 = sphi 0, %s280
    %s297 = sphi 0, %s281
    %s303 = sphi 0, %s305
    %s306 = sphi 0, %s303
    %s307 = sphi 0, %s306
    %s323 = sphi 0, %s307
    %s329 = sphi 0, %s331
    %s332 = sphi 0, %s329
    %s333 = sphi 0, %s332
    %s349 = sphi 0, %s333
    %s355 = sphi 0, %s357
    %s358 = sphi 0, %s355
    %s359 = sphi 0, %s358
    %s375 = sphi 0, %s359
    %s379 = sphi 0, %s379
    %s381 = sphi 0, %s379
    %s382 = sphi 0, %s381
    %s396 = sphi 0, %s382
    %s400 = sphi 0, %s400
    %s402 = sphi 0, %s400
    %s403 = sphi 0, %s402
    %s417 = sphi 0, %s403
    %s423 = sphi 0, %s425
    %s426 = sphi 0, %s423
    %s427 = sphi 0, %s426
    %s443 = sphi 0, %s427
  $region4: #{_lambda_.1} parent=0 // loop_header_branch
    %24 = sbr.rel (%p22) target = $region8
  $region5: #{_lambda_.1} parent=0 // loop_body
    %s26 = ssub.s32 %s21, 1
    %s27 = ssub.s32 %s21, 2
    %s34 = sadd.s32 1, %s29
    %p35 = scmp.ge.s32.totalorder %s34, 2
    %s36 = scalar_select %p35, 0, %s34
    %s37 = sadd.s32 1, %s28
    %s38 = scalar_select %p35, %s37, %s28
    %p39 = scmp.ge.s32.totalorder %s38, 2
    %s40 = scalar_select %p39, 0, %s38
    %s41 = ssub.s32 %s28, %s40
    %p42 = scmp.eq.s32.totalorder %s41, 0
    %s44 = sadd.s32 %s43, 1
    %s45 = scalar_select %p42, %s43, %s44
    %p48 = pneg %p42
    %p49 = scmp.eq.s32.totalorder %s21, 3
    %p50 = por %p48, %p49
    %p51 = scmp.ne.s32.totalorder %s43, %s46
    %p52 = scmp.eq.s32.totalorder %s21, 0
    %p53 = por %p51, %p52
    %p54 = scmp.ne.s32.totalorder %s43, %s46
    %p55 = scmp.eq.s32.totalorder %s26, 3
    %p56 = por %p54, %p55
    %p57 = scmp.ne.s32.totalorder %s46, %s47
    %p58 = scmp.eq.s32.totalorder %s26, 0
    %p59 = por %p57, %p58
    %p60 = scmp.ne.s32.totalorder %s46, %s47
    %p61 = scmp.eq.s32.totalorder %s27, 3
    %p62 = por %p60, %p61
    %p64 = scmp.ne.s32.totalorder %s47, %s63
    %p65 = scmp.eq.s32.totalorder %s27, 0
    %p66 = por %p64, %p65
    %s67 = ssub.s32 %s29, %s36
    %p68 = scmp.eq.s32.totalorder %s67, 0
    %s70 = sadd.s32 %s69, 1
    %s71 = scalar_select %p68, %s69, %s70
    %p74 = pneg %p68
    %p75 = scmp.eq.s32.totalorder %s21, 3
    %p76 = por %p74, %p75
    %p77 = scmp.ne.s32.totalorder %s69, %s72
    %p78 = scmp.eq.s32.totalorder %s21, 0
    %p79 = por %p77, %p78
    %p80 = scmp.ne.s32.totalorder %s69, %s72
    %p81 = scmp.eq.s32.totalorder %s26, 3
    %p82 = por %p80, %p81
    %p83 = scmp.ne.s32.totalorder %s72, %s73
    %p84 = scmp.eq.s32.totalorder %s26, 0
    %p85 = por %p83, %p84
    %p86 = scmp.ne.s32.totalorder %s72, %s73
    %p87 = scmp.eq.s32.totalorder %s27, 3
    %p88 = por %p86, %p87
    %p90 = scmp.ne.s32.totalorder %s73, %s89
    %p91 = scmp.eq.s32.totalorder %s27, 0
    %p92 = por %p90, %p91
    %s93 = ssub.s32 %s29, %s36
    %p94 = scmp.eq.s32.totalorder %s93, 0
    %s96 = sadd.s32 %s95, 1
    %s97 = scalar_select %p94, %s95, %s96
    %p100 = pneg %p94
    %p101 = scmp.eq.s32.totalorder %s21, 3
    %p102 = por %p100, %p101
    %p103 = scmp.ne.s32.totalorder %s95, %s98
    %p104 = scmp.eq.s32.totalorder %s21, 0
    %p105 = por %p103, %p104
    %p106 = scmp.ne.s32.totalorder %s95, %s98
    %p107 = scmp.eq.s32.totalorder %s26, 3
    %p108 = por %p106, %p107
    %p109 = scmp.ne.s32.totalorder %s98, %s99
    %p110 = scmp.eq.s32.totalorder %s26, 0
    %p111 = por %p109, %p110
    %p112 = scmp.ne.s32.totalorder %s98, %s99
    %p113 = scmp.eq.s32.totalorder %s27, 3
    %p114 = por %p112, %p113
    %p116 = scmp.ne.s32.totalorder %s99, %s115
    %p117 = scmp.eq.s32.totalorder %s27, 0
    %p118 = por %p116, %p117
    %s119 = ssub.s32 %s29, %s36
    %p120 = scmp.eq.s32.totalorder %s119, 0
    %s122 = sadd.s32 %s121, 1
    %s123 = scalar_select %p120, %s121, %s122
    %p126 = pneg %p120
    %p127 = scmp.eq.s32.totalorder %s21, 3
    %p128 = por %p126, %p127
    %p129 = scmp.ne.s32.totalorder %s121, %s124
    %p130 = scmp.eq.s32.totalorder %s21, 0
    %p131 = por %p129, %p130
    %p132 = scmp.ne.s32.totalorder %s121, %s124
    %p133 = scmp.eq.s32.totalorder %s26, 3
    %p134 = por %p132, %p133
    %p135 = scmp.ne.s32.totalorder %s124, %s125
    %p136 = scmp.eq.s32.totalorder %s26, 0
    %p137 = por %p135, %p136
    %p138 = scmp.ne.s32.totalorder %s124, %s125
    %p139 = scmp.eq.s32.totalorder %s27, 3
    %p140 = por %p138, %p139
    %p142 = scmp.ne.s32.totalorder %s125, %s141
    %p143 = scmp.eq.s32.totalorder %s27, 0
    %p144 = por %p142, %p143
    %s145 = ssub.s32 %s29, %s36
    %p146 = scmp.eq.s32.totalorder %s145, 0
    %s148 = sadd.s32 %s147, 1
    %s149 = scalar_select %p146, %s147, %s148
    %p152 = pneg %p146
    %p153 = scmp.eq.s32.totalorder %s21, 3
    %p154 = por %p152, %p153
    %p155 = scmp.ne.s32.totalorder %s147, %s150
    %p156 = scmp.eq.s32.totalorder %s21, 0
    %p157 = por %p155, %p156
    %p158 = scmp.ne.s32.totalorder %s147, %s150
    %p159 = scmp.eq.s32.totalorder %s26, 3
    %p160 = por %p158, %p159
    %p161 = scmp.ne.s32.totalorder %s150, %s151
    %p162 = scmp.eq.s32.totalorder %s26, 0
    %p163 = por %p161, %p162
    %p164 = scmp.ne.s32.totalorder %s150, %s151
    %p165 = scmp.eq.s32.totalorder %s27, 3
    %p166 = por %p164, %p165
    %p168 = scmp.ne.s32.totalorder %s151, %s167
    %p169 = scmp.eq.s32.totalorder %s27, 0
    %p170 = por %p168, %p169
    %s171 = ssub.s32 %s29, %s36
    %p172 = scmp.eq.s32.totalorder %s171, 0
    %s174 = sadd.s32 %s173, 1
    %s175 = scalar_select %p172, %s173, %s174
    %p178 = pneg %p172
    %p179 = scmp.eq.s32.totalorder %s21, 3
    %p180 = por %p178, %p179
    %p181 = scmp.ne.s32.totalorder %s173, %s176
    %p182 = scmp.eq.s32.totalorder %s21, 0
    %p183 = por %p181, %p182
    %p184 = scmp.ne.s32.totalorder %s173, %s176
    %p185 = scmp.eq.s32.totalorder %s26, 3
    %p186 = por %p184, %p185
    %p187 = scmp.ne.s32.totalorder %s176, %s177
    %p188 = scmp.eq.s32.totalorder %s26, 0
    %p189 = por %p187, %p188
    %p190 = scmp.ne.s32.totalorder %s176, %s177
    %p191 = scmp.eq.s32.totalorder %s27, 3
    %p192 = por %p190, %p191
    %p194 = scmp.ne.s32.totalorder %s177, %s193
    %p195 = scmp.eq.s32.totalorder %s27, 0
    %p196 = por %p194, %p195
    %s197 = ssub.s32 %s29, %s36
    %p198 = scmp.eq.s32.totalorder %s197, 0
    %s200 = sadd.s32 %s199, 1
    %s201 = scalar_select %p198, %s199, %s200
    %p204 = pneg %p198
    %p205 = scmp.eq.s32.totalorder %s21, 3
    %p206 = por %p204, %p205
    %p207 = scmp.ne.s32.totalorder %s199, %s202
    %p208 = scmp.eq.s32.totalorder %s21, 0
    %p209 = por %p207, %p208
    %p210 = scmp.ne.s32.totalorder %s199, %s202
    %p211 = scmp.eq.s32.totalorder %s26, 3
    %p212 = por %p210, %p211
    %p213 = scmp.ne.s32.totalorder %s202, %s203
    %p214 = scmp.eq.s32.totalorder %s26, 0
    %p215 = por %p213, %p214
    %p216 = scmp.ne.s32.totalorder %s202, %s203
    %p217 = scmp.eq.s32.totalorder %s27, 3
    %p218 = por %p216, %p217
    %p220 = scmp.ne.s32.totalorder %s203, %s219
    %p221 = scmp.eq.s32.totalorder %s27, 0
    %p222 = por %p220, %p221
    %s223 = ssub.s32 %s29, %s36
    %p224 = scmp.eq.s32.totalorder %s223, 0
    %s226 = sadd.s32 %s225, 1
    %s227 = scalar_select %p224, %s225, %s226
    %p230 = pneg %p224
    %p231 = scmp.eq.s32.totalorder %s21, 3
    %p232 = por %p230, %p231
    %p233 = scmp.ne.s32.totalorder %s225, %s228
    %p234 = scmp.eq.s32.totalorder %s21, 0
    %p235 = por %p233, %p234
    %p236 = scmp.ne.s32.totalorder %s225, %s228
    %p237 = scmp.eq.s32.totalorder %s26, 3
    %p238 = por %p236, %p237
    %p239 = scmp.ne.s32.totalorder %s228, %s229
    %p240 = scmp.eq.s32.totalorder %s26, 0
    %p241 = por %p239, %p240
    %p242 = scmp.ne.s32.totalorder %s228, %s229
    %p243 = scmp.eq.s32.totalorder %s27, 3
    %p244 = por %p242, %p243
    %p246 = scmp.ne.s32.totalorder %s229, %s245
    %p247 = scmp.eq.s32.totalorder %s27, 0
    %p248 = por %p246, %p247
    %s249 = ssub.s32 %s29, %s36
    %p250 = scmp.eq.s32.totalorder %s249, 0
    %s252 = sadd.s32 %s251, 1
    %s253 = scalar_select %p250, %s251, %s252
    %p256 = pneg %p250
    %p257 = scmp.eq.s32.totalorder %s21, 3
    %p258 = por %p256, %p257
    %p259 = scmp.ne.s32.totalorder %s251, %s254
    %p260 = scmp.eq.s32.totalorder %s21, 0
    %p261 = por %p259, %p260
    %p262 = scmp.ne.s32.totalorder %s251, %s254
    %p263 = scmp.eq.s32.totalorder %s26, 3
    %p264 = por %p262, %p263
    %p265 = scmp.ne.s32.totalorder %s254, %s255
    %p266 = scmp.eq.s32.totalorder %s26, 0
    %p267 = por %p265, %p266
    %p268 = scmp.ne.s32.totalorder %s254, %s255
    %p269 = scmp.eq.s32.totalorder %s27, 3
    %p270 = por %p268, %p269
    %p272 = scmp.ne.s32.totalorder %s255, %s271
    %p273 = scmp.eq.s32.totalorder %s27, 0
    %p274 = por %p272, %p273
    %s275 = ssub.s32 %s29, %s36
    %p276 = scmp.eq.s32.totalorder %s275, 0
    %s278 = sadd.s32 %s277, 1
    %s279 = scalar_select %p276, %s277, %s278
    %p282 = pneg %p276
    %p283 = scmp.eq.s32.totalorder %s21, 3
    %p284 = por %p282, %p283
    %p285 = scmp.ne.s32.totalorder %s277, %s280
    %p286 = scmp.eq.s32.totalorder %s21, 0
    %p287 = por %p285, %p286
    %p288 = scmp.ne.s32.totalorder %s277, %s280
    %p289 = scmp.eq.s32.totalorder %s26, 3
    %p290 = por %p288, %p289
    %p291 = scmp.ne.s32.totalorder %s280, %s281
    %p292 = scmp.eq.s32.totalorder %s26, 0
    %p293 = por %p291, %p292
    %p294 = scmp.ne.s32.totalorder %s280, %s281
    %p295 = scmp.eq.s32.totalorder %s27, 3
    %p296 = por %p294, %p295
    %p298 = scmp.ne.s32.totalorder %s281, %s297
    %p299 = scmp.eq.s32.totalorder %s27, 0
    %p300 = por %p298, %p299
    %s301 = ssub.s32 %s29, %s36
    %p302 = scmp.eq.s32.totalorder %s301, 0
    %s304 = sadd.s32 %s303, 1
    %s305 = scalar_select %p302, %s303, %s304
    %p308 = pneg %p302
    %p309 = scmp.eq.s32.totalorder %s21, 3
    %p310 = por %p308, %p309
    %p311 = scmp.ne.s32.totalorder %s303, %s306
    %p312 = scmp.eq.s32.totalorder %s21, 0
    %p313 = por %p311, %p312
    %p314 = scmp.ne.s32.totalorder %s303, %s306
    %p315 = scmp.eq.s32.totalorder %s26, 3
    %p316 = por %p314, %p315
    %p317 = scmp.ne.s32.totalorder %s306, %s307
    %p318 = scmp.eq.s32.totalorder %s26, 0
    %p319 = por %p317, %p318
    %p320 = scmp.ne.s32.totalorder %s306, %s307
    %p321 = scmp.eq.s32.totalorder %s27, 3
    %p322 = por %p320, %p321
    %p324 = scmp.ne.s32.totalorder %s307, %s323
    %p325 = scmp.eq.s32.totalorder %s27, 0
    %p326 = por %p324, %p325
    %s327 = ssub.s32 %s29, %s36
    %p328 = scmp.eq.s32.totalorder %s327, 0
    %s330 = sadd.s32 %s329, 1
    %s331 = scalar_select %p328, %s329, %s330
    %p334 = pneg %p328
    %p335 = scmp.eq.s32.totalorder %s21, 3
    %p336 = por %p334, %p335
    %p337 = scmp.ne.s32.totalorder %s329, %s332
    %p338 = scmp.eq.s32.totalorder %s21, 0
    %p339 = por %p337, %p338
    %p340 = scmp.ne.s32.totalorder %s329, %s332
    %p341 = scmp.eq.s32.totalorder %s26, 3
    %p342 = por %p340, %p341
    %p343 = scmp.ne.s32.totalorder %s332, %s333
    %p344 = scmp.eq.s32.totalorder %s26, 0
    %p345 = por %p343, %p344
    %p346 = scmp.ne.s32.totalorder %s332, %s333
    %p347 = scmp.eq.s32.totalorder %s27, 3
    %p348 = por %p346, %p347
    %p350 = scmp.ne.s32.totalorder %s333, %s349
    %p351 = scmp.eq.s32.totalorder %s27, 0
    %p352 = por %p350, %p351
    %s353 = ssub.s32 %s29, %s36
    %p354 = scmp.eq.s32.totalorder %s353, 0
    %s356 = sadd.s32 %s355, 1
    %s357 = scalar_select %p354, %s355, %s356
    %p360 = pneg %p354
    %p361 = scmp.eq.s32.totalorder %s21, 3
    %p362 = por %p360, %p361
    %p363 = scmp.ne.s32.totalorder %s355, %s358
    %p364 = scmp.eq.s32.totalorder %s21, 0
    %p365 = por %p363, %p364
    %p366 = scmp.ne.s32.totalorder %s355, %s358
    %p367 = scmp.eq.s32.totalorder %s26, 3
    %p368 = por %p366, %p367
    %p369 = scmp.ne.s32.totalorder %s358, %s359
    %p370 = scmp.eq.s32.totalorder %s26, 0
    %p371 = por %p369, %p370
    %p372 = scmp.ne.s32.totalorder %s358, %s359
    %p373 = scmp.eq.s32.totalorder %s27, 3
    %p374 = por %p372, %p373
    %p376 = scmp.ne.s32.totalorder %s359, %s375
    %p377 = scmp.eq.s32.totalorder %s27, 0
    %p378 = por %p376, %p377
    %s380 = sadd.s32 %s379, 1
    %p383 = scmp.eq.s32.totalorder %s21, 3
    %p384 = scmp.ne.s32.totalorder %s379, %s381
    %p385 = scmp.eq.s32.totalorder %s21, 0
    %p386 = por %p384, %p385
    %p387 = scmp.ne.s32.totalorder %s379, %s381
    %p388 = scmp.eq.s32.totalorder %s26, 3
    %p389 = por %p387, %p388
    %p390 = scmp.ne.s32.totalorder %s381, %s382
    %p391 = scmp.eq.s32.totalorder %s26, 0
    %p392 = por %p390, %p391
    %p393 = scmp.ne.s32.totalorder %s381, %s382
    %p394 = scmp.eq.s32.totalorder %s27, 3
    %p395 = por %p393, %p394
    %p397 = scmp.ne.s32.totalorder %s382, %s396
    %p398 = scmp.eq.s32.totalorder %s27, 0
    %p399 = por %p397, %p398
    %s401 = sadd.s32 %s400, 1
    %p404 = scmp.eq.s32.totalorder %s21, 3
    %p405 = scmp.ne.s32.totalorder %s400, %s402
    %p406 = scmp.eq.s32.totalorder %s21, 0
    %p407 = por %p405, %p406
    %p408 = scmp.ne.s32.totalorder %s400, %s402
    %p409 = scmp.eq.s32.totalorder %s26, 3
    %p410 = por %p408, %p409
    %p411 = scmp.ne.s32.totalorder %s402, %s403
    %p412 = scmp.eq.s32.totalorder %s26, 0
    %p413 = por %p411, %p412
    %p414 = scmp.ne.s32.totalorder %s402, %s403
    %p415 = scmp.eq.s32.totalorder %s27, 3
    %p416 = por %p414, %p415
    %p418 = scmp.ne.s32.totalorder %s403, %s417
    %p419 = scmp.eq.s32.totalorder %s27, 0
    %p420 = por %p418, %p419
    %s421 = ssub.s32 %s28, %s40
    %p422 = scmp.eq.s32.totalorder %s421, 0
    %s424 = sadd.s32 %s423, 1
    %s425 = scalar_select %p422, %s423, %s424
    %p428 = pneg %p422
    %p429 = scmp.eq.s32.totalorder %s21, 3
    %p430 = por %p428, %p429
    %p431 = scmp.ne.s32.totalorder %s423, %s426
    %p432 = scmp.eq.s32.totalorder %s21, 0
    %p433 = por %p431, %p432
    %p434 = scmp.ne.s32.totalorder %s423, %s426
    %p435 = scmp.eq.s32.totalorder %s26, 3
    %p436 = por %p434, %p435
    %p437 = scmp.ne.s32.totalorder %s426, %s427
    %p438 = scmp.eq.s32.totalorder %s26, 0
    %p439 = por %p437, %p438
    %p440 = scmp.ne.s32.totalorder %s426, %s427
    %p441 = scmp.eq.s32.totalorder %s27, 3
    %p442 = por %p440, %p441
    %p444 = scmp.ne.s32.totalorder %s427, %s443
    %p445 = scmp.eq.s32.totalorder %s27, 0
    %p446 = por %p444, %p445
    %p447 = scmp.le.s32.totalorder 1, %s21
    %p448 = scmp.lt.s32.totalorder %s21, 5
    %p449 = pnand %p447, %p448
    %p450 = pneg %p449
    // Predicated region
    $region9: #{_lambda_.1} parent=5 // pred_check
      _
    $region10: #{_lambda_.1} parent=5 // pred_check_branch
      %452 = sbr.rel (%p449) target = $region12
    $region11: #{_lambda_.1} parent=5 // pred_region
      %s453 = ssub.s32 %s21, 1
      // Predicated region
      $region13: #{_lambda_.1} parent=11 // pred_check
        %p454 = pneg %p392
      $region14: #{_lambda_.1} parent=11 // pred_check_branch
        %456 = sbr.rel (%p454) target = $region16
      $region15: #{_lambda_.1} parent=11 // pred_region
        _
      $region16: #{_lambda_.1} parent=11 // pred_fallthru
        _
      // Predicated region
      $region17: #{_lambda_.1} parent=11 // pred_check
        %p457 = pneg %p413
      $region18: #{_lambda_.1} parent=11 // pred_check_branch
        %459 = sbr.rel (%p457) target = $region20
      $region19: #{_lambda_.1} parent=11 // pred_region
        _
      $region20: #{_lambda_.1} parent=11 // pred_fallthru
        _
    $region12: #{_lambda_.1} parent=5 // pred_fallthru
      _
    %p460 = scmp.lt.s32.totalorder %s21, 4
    // Predicated region
    $region21: #{_lambda_.1} parent=5 // pred_check
      %p461 = pneg %p460
    $region22: #{_lambda_.1} parent=5 // pred_check_branch
      %463 = sbr.rel (%p461) target = $region24
    $region23: #{_lambda_.1} parent=5 // pred_region
      // Predicated region
      $region25: #{_lambda_.1} parent=23 // pred_check
        %p464 = pneg %p53
      $region26: #{_lambda_.1} parent=23 // pred_check_branch
        %466 = sbr.rel (%p464) target = $region28
      $region27: #{_lambda_.1} parent=23 // pred_region
        %p467 = scmp.lt.s32.totalorder %s28, 1
        %s468 = scalar_select %p467, %s28, 1
        %s469 = smul.addr %s468, 3
        %s470 = smul.addr %s469, 8
        %s471 = scalar_lea.vmem %s0, %s470
      $region28: #{_lambda_.1} parent=23 // pred_fallthru
        _
      // Predicated region
      $region29: #{_lambda_.1} parent=23 // pred_check
        %p472 = pneg %p79
      $region30: #{_lambda_.1} parent=23 // pred_check_branch
        %474 = sbr.rel (%p472) target = $region32
      $region31: #{_lambda_.1} parent=23 // pred_region
        %p475 = scmp.lt.s32.totalorder %s29, 1
        %s476 = scalar_select %p475, %s29, 1
        %s477 = scalar_lea.vmem %s1, %s476
      $region32: #{_lambda_.1} parent=23 // pred_fallthru
        _
      // Predicated region
      $region33: #{_lambda_.1} parent=23 // pred_check
        %p478 = pneg %p105
      $region34: #{_lambda_.1} parent=23 // pred_check_branch
        %480 = sbr.rel (%p478) target = $region36
      $region35: #{_lambda_.1} parent=23 // pred_region
        %p481 = scmp.lt.s32.totalorder %s29, 1
        %s482 = scalar_select %p481, %s29, 1
        %s483 = scalar_lea.vmem %s2, %s482
      $region36: #{_lambda_.1} parent=23 // pred_fallthru
        _
      // Predicated region
      $region37: #{_lambda_.1} parent=23 // pred_check
        %p484 = pneg %p131
      $region38: #{_lambda_.1} parent=23 // pred_check_branch
        %486 = sbr.rel (%p484) target = $region40
      $region39: #{_lambda_.1} parent=23 // pred_region
        %p487 = scmp.lt.s32.totalorder %s29, 1
        %s488 = scalar_select %p487, %s29, 1
        %s489 = smul.addr %s488, 16
        %s490 = smul.addr %s489, 4
        %s491 = scalar_lea.vmem %s3, %s490
      $region40: #{_lambda_.1} parent=23 // pred_fallthru
        _
      // Predicated region
      $region41: #{_lambda_.1} parent=23 // pred_check
        %p492 = pneg %p157
      $region42: #{_lambda_.1} parent=23 // pred_check_branch
        %494 = sbr.rel (%p492) target = $region44
      $region43: #{_lambda_.1} parent=23 // pred_region
        %p495 = scmp.lt.s32.totalorder %s29, 1
        %s496 = scalar_select %p495, %s29, 1
        %s497 = scalar_lea.vmem %s4, %s496
      $region44: #{_lambda_.1} parent=23 // pred_fallthru
        _
      // Predicated region
      $region45: #{_lambda_.1} parent=23 // pred_check
        %p498 = pneg %p183
      $region46: #{_lambda_.1} parent=23 // pred_check_branch
        %500 = sbr.rel (%p498) target = $region48
      $region47: #{_lambda_.1} parent=23 // pred_region
        %p501 = scmp.lt.s32.totalorder %s29, 1
        %s502 = scalar_select %p501, %s29, 1
        %s503 = smul.addr %s502, 4
        %s504 = smul.addr %s503, 4
        %s505 = scalar_lea.vmem %s5, %s504
      $region48: #{_lambda_.1} parent=23 // pred_fallthru
        _
      // Predicated region
      $region49: #{_lambda_.1} parent=23 // pred_check
        %p506 = pneg %p209
      $region50: #{_lambda_.1} parent=23 // pred_check_branch
        %508 = sbr.rel (%p506) target = $region52
      $region51: #{_lambda_.1} parent=23 // pred_region
        %p509 = scmp.lt.s32.totalorder %s29, 1
        %s510 = scalar_select %p509, %s29, 1
        %s511 = scalar_lea.vmem %s6, %s510
      $region52: #{_lambda_.1} parent=23 // pred_fallthru
        _
      // Predicated region
      $region53: #{_lambda_.1} parent=23 // pred_check
        %p512 = pneg %p235
      $region54: #{_lambda_.1} parent=23 // pred_check_branch
        %514 = sbr.rel (%p512) target = $region56
      $region55: #{_lambda_.1} parent=23 // pred_region
        %p515 = scmp.lt.s32.totalorder %s29, 1
        %s516 = scalar_select %p515, %s29, 1
        %s517 = scalar_lea.vmem %s7, %s516
      $region56: #{_lambda_.1} parent=23 // pred_fallthru
        _
      // Predicated region
      $region57: #{_lambda_.1} parent=23 // pred_check
        %p518 = pneg %p261
      $region58: #{_lambda_.1} parent=23 // pred_check_branch
        %520 = sbr.rel (%p518) target = $region60
      $region59: #{_lambda_.1} parent=23 // pred_region
        %p521 = scmp.lt.s32.totalorder %s29, 1
        %s522 = scalar_select %p521, %s29, 1
        %s523 = scalar_lea.vmem %s8, %s522
      $region60: #{_lambda_.1} parent=23 // pred_fallthru
        _
      // Predicated region
      $region61: #{_lambda_.1} parent=23 // pred_check
        %p524 = pneg %p287
      $region62: #{_lambda_.1} parent=23 // pred_check_branch
        %526 = sbr.rel (%p524) target = $region64
      $region63: #{_lambda_.1} parent=23 // pred_region
        %p527 = scmp.lt.s32.totalorder %s29, 1
        %s528 = scalar_select %p527, %s29, 1
        %s529 = smul.addr %s528, 16
        %s530 = smul.addr %s529, 4
        %s531 = scalar_lea.vmem %s9, %s530
      $region64: #{_lambda_.1} parent=23 // pred_fallthru
        _
      // Predicated region
      $region65: #{_lambda_.1} parent=23 // pred_check
        %p532 = pneg %p313
      $region66: #{_lambda_.1} parent=23 // pred_check_branch
        %534 = sbr.rel (%p532) target = $region68
      $region67: #{_lambda_.1} parent=23 // pred_region
        %p535 = scmp.lt.s32.totalorder %s29, 1
        %s536 = scalar_select %p535, %s29, 1
        %s537 = scalar_lea.vmem %s10, %s536
      $region68: #{_lambda_.1} parent=23 // pred_fallthru
        _
      // Predicated region
      $region69: #{_lambda_.1} parent=23 // pred_check
        %p538 = pneg %p339
      $region70: #{_lambda_.1} parent=23 // pred_check_branch
        %540 = sbr.rel (%p538) target = $region72
      $region71: #{_lambda_.1} parent=23 // pred_region
        %p541 = scmp.lt.s32.totalorder %s29, 1
        %s542 = scalar_select %p541, %s29, 1
        %s543 = smul.addr %s542, 16
        %s544 = smul.addr %s543, 4
        %s545 = scalar_lea.vmem %s11, %s544
      $region72: #{_lambda_.1} parent=23 // pred_fallthru
        _
      // Predicated region
      $region73: #{_lambda_.1} parent=23 // pred_check
        %p546 = pneg %p365
      $region74: #{_lambda_.1} parent=23 // pred_check_branch
        %548 = sbr.rel (%p546) target = $region76
      $region75: #{_lambda_.1} parent=23 // pred_region
        %p549 = scmp.lt.s32.totalorder %s29, 1
        %s550 = scalar_select %p549, %s29, 1
        %s551 = scalar_lea.vmem %s12, %s550
      $region76: #{_lambda_.1} parent=23 // pred_fallthru
        _
    $region24: #{_lambda_.1} parent=5 // pred_fallthru
      _
    %p552 = scmp.le.s32.totalorder 1, %s21
    %p553 = scmp.lt.s32.totalorder %s21, 5
    %p554 = pnand %p552, %p553
    %p555 = pneg %p554
    // Predicated region
    $region77: #{_lambda_.1} parent=5 // pred_check
      _
    $region78: #{_lambda_.1} parent=5 // pred_check_branch
      %557 = sbr.rel (%p554) target = $region80
    $region79: #{_lambda_.1} parent=5 // pred_region
      %s558 = ssub.s32 %s21, 1
      %p559 = scmp.lt.s32.totalorder %s30, 1
      %s560 = scalar_select %p559, %s30, 1
      %s561 = smul.addr %s560, 3
      %s562 = smul.addr %s561, 8
      %s563 = scalar_lea.vmem %s0, %s562
      %p564 = pneg %p59
      %p565 = pneg %p56
      %p566 = scmp.lt.s32.totalorder %s31, 1
      %s567 = scalar_select %p566, %s31, 1
      %s568 = scalar_lea.vmem %s1, %s567
      %p569 = pneg %p85
      %p570 = pneg %p82
      %p571 = scmp.lt.s32.totalorder %s31, 1
      %s572 = scalar_select %p571, %s31, 1
      %s573 = scalar_lea.vmem %s2, %s572
      %p574 = pneg %p111
      %p575 = pneg %p108
      %p576 = scmp.lt.s32.totalorder %s31, 1
      %s577 = scalar_select %p576, %s31, 1
      %s578 = smul.addr %s577, 16
      %s579 = smul.addr %s578, 4
      %s580 = scalar_lea.vmem %s3, %s579
      %p581 = pneg %p137
      %p582 = pneg %p134
      %p583 = scmp.lt.s32.totalorder %s31, 1
      %s584 = scalar_select %p583, %s31, 1
      %s585 = scalar_lea.vmem %s4, %s584
      %p586 = pneg %p163
      %p587 = pneg %p160
      %p588 = scmp.lt.s32.totalorder %s31, 1
      %s589 = scalar_select %p588, %s31, 1
      %s590 = smul.addr %s589, 4
      %s591 = smul.addr %s590, 4
      %s592 = scalar_lea.vmem %s5, %s591
      %p593 = pneg %p189
      %p594 = pneg %p186
      %p595 = scmp.lt.s32.totalorder %s31, 1
      %s596 = scalar_select %p595, %s31, 1
      %s597 = scalar_lea.vmem %s6, %s596
      %p598 = pneg %p215
      %p599 = pneg %p212
      %p600 = scmp.lt.s32.totalorder %s31, 1
      %s601 = scalar_select %p600, %s31, 1
      %s602 = scalar_lea.vmem %s7, %s601
      %p603 = pneg %p241
      %p604 = pneg %p238
      %p605 = scmp.lt.s32.totalorder %s31, 1
      %s606 = scalar_select %p605, %s31, 1
      %s607 = scalar_lea.vmem %s8, %s606
      %p608 = pneg %p267
      %p609 = pneg %p264
      %p610 = scmp.lt.s32.totalorder %s31, 1
      %s611 = scalar_select %p610, %s31, 1
      %s612 = smul.addr %s611, 16
      %s613 = smul.addr %s612, 4
      %s614 = scalar_lea.vmem %s9, %s613
      %p615 = pneg %p293
      %p616 = pneg %p290
      %p617 = scmp.lt.s32.totalorder %s31, 1
      %s618 = scalar_select %p617, %s31, 1
      %s619 = scalar_lea.vmem %s10, %s618
      %p620 = pneg %p319
      %p621 = pneg %p316
      %p622 = scmp.lt.s32.totalorder %s31, 1
      %s623 = scalar_select %p622, %s31, 1
      %s624 = smul.addr %s623, 16
      %s625 = smul.addr %s624, 4
      %s626 = scalar_lea.vmem %s11, %s625
      %p627 = pneg %p345
      %p628 = pneg %p342
      %p629 = scmp.lt.s32.totalorder %s31, 1
      %s630 = scalar_select %p629, %s31, 1
      %s631 = scalar_lea.vmem %s12, %s630
      %p632 = pneg %p371
      %p633 = pneg %p368
      %p634 = pneg %p392
      %p635 = pneg %p389
      %p636 = pneg %p413
      %p637 = pneg %p410
      %p638 = pneg %p439
      %p639 = pneg %p436
      %p640 = scmp.lt.s32.totalorder %s30, 1
      %s641 = scalar_select %p640, %s30, 1
      %s642 = smul.addr %s641, 3
      %s643 = smul.addr %s642, 8
      %s644 = scalar_lea.vmem %s15, %s643
      %p645 = scmp.lt.s32.totalorder %s30, 1
      %s646 = scalar_select %p645, %s30, 1
      %s647 = smul.addr %s646, 3
      %s648 = smul.addr %s647, 8
      %s649 = scalar_lea.vmem %s0, %s648
      %p650 = scmp.lt.s32.totalorder %s31, 1
      %s651 = scalar_select %p650, %s31, 1
      %s652 = scalar_lea.vmem %s1, %s651
      %p653 = scmp.lt.s32.totalorder %s31, 1
      %s654 = scalar_select %p653, %s31, 1
      %s655 = scalar_lea.vmem %s2, %s654
      %p656 = scmp.lt.s32.totalorder %s31, 1
      %s657 = scalar_select %p656, %s31, 1
      %s658 = smul.addr %s657, 16
      %s659 = smul.addr %s658, 4
      %s660 = scalar_lea.vmem %s3, %s659
      %p661 = scmp.lt.s32.totalorder %s31, 1
      %s662 = scalar_select %p661, %s31, 1
      %s663 = scalar_lea.vmem %s4, %s662
      %p664 = scmp.lt.s32.totalorder %s31, 1
      %s665 = scalar_select %p664, %s31, 1
      %s666 = smul.addr %s665, 4
      %s667 = smul.addr %s666, 4
      %s668 = scalar_lea.vmem %s5, %s667
      %p669 = scmp.lt.s32.totalorder %s31, 1
      %s670 = scalar_select %p669, %s31, 1
      %s671 = scalar_lea.vmem %s6, %s670
      %p672 = scmp.lt.s32.totalorder %s31, 1
      %s673 = scalar_select %p672, %s31, 1
      %s674 = scalar_lea.vmem %s7, %s673
      %p675 = scmp.lt.s32.totalorder %s31, 1
      %s676 = scalar_select %p675, %s31, 1
      %s677 = scalar_lea.vmem %s8, %s676
      %p678 = scmp.lt.s32.totalorder %s31, 1
      %s679 = scalar_select %p678, %s31, 1
      %s680 = smul.addr %s679, 16
      %s681 = smul.addr %s680, 4
      %s682 = scalar_lea.vmem %s9, %s681
      %p683 = scmp.lt.s32.totalorder %s31, 1
      %s684 = scalar_select %p683, %s31, 1
      %s685 = scalar_lea.vmem %s10, %s684
      %p686 = scmp.lt.s32.totalorder %s31, 1
      %s687 = scalar_select %p686, %s31, 1
      %s688 = smul.addr %s687, 16
      %s689 = smul.addr %s688, 4
      %s690 = scalar_lea.vmem %s11, %s689
      %p691 = scmp.lt.s32.totalorder %s31, 1
      %s692 = scalar_select %p691, %s31, 1
      %s693 = scalar_lea.vmem %s12, %s692
      %p694 = scmp.lt.s32.totalorder %s30, 1
      %s695 = scalar_select %p694, %s30, 1
      %s696 = smul.addr %s695, 3
      %s697 = smul.addr %s696, 8
      %s698 = scalar_lea.vmem %s15, %s697
      %p700 = scmp.eq.s32.totalorder %s31, 0
      // Predicated region
      $region81: #{_lambda_.1} parent=79 // pred_check
        %p701 = pneg %p700
      $region82: #{_lambda_.1} parent=79 // pred_check_branch
        %703 = sbr.rel (%p701) target = $region84
      $region83: #{_lambda_.1} parent=79 // pred_region
        %v704 = vld [vmem:[%s649] sm:$0xff]
        %v705 = vld [vmem:[%s649 + $0x8] sm:$0xff]
        %v706 = vld [vmem:[%s649 + $0x10] sm:$0x1f]
        %707 = vst [vmem:[%s698] sm:$0xff] %v704
        %708 = vst [vmem:[%s698 + $0x8] sm:$0xff] %v705
        %709 = vst [vmem:[%s698 + $0x10] sm:$0x1f] %v706
      $region84: #{_lambda_.1} parent=79 // pred_fallthru
        _
      %v710 = vld [vmem:[%s698] sm:$0xff]
      %v711 = vld [vmem:[%s698 + $0x8] sm:$0xff]
      %v712 = vld [vmem:[%s698 + $0x10] sm:$0x1f]
      %v713 = vld [vmem:[%s652] sm:$0x1]
      %v714 = vld [vmem:[%s655] sm:$0x1]
      %v715 = vlaneseq
      %v716 = vand.u32 %v715, 127
      %vm717 = vcmp.lt.s32.totalorder %v716, 32
      %v718 = vsel %vm717, 1, 0
      %v719 = vcvt.s32.f32 %v718
      %720 = vadd.xlane.f32.xlu0 %v710
      %v721 = vpop.xlane.xlu0 %720
      %722 = vadd.xlane.f32.xlu0 %v711
      %v723 = vpop.xlane.xlu0 %722
      %vm724 = vcmask 1044480
      %v725 = vsel %vm724, %v712, 0.0
      %726 = vadd.xlane.f32.xlu0 %v725
      %v727 = vpop.xlane.xlu0 %726
      %v728 = vmul.f32 %v721, 0.03125
      %v729 = vmul.f32 %v723, 0.03125
      %v730 = vmul.f32 %v727, 0.03125
      %v731 = vsub.f32 %v710, %v728
      %v732 = vsub.f32 %v711, %v729
      %v733 = vsub.f32 %v712, %v730
      %v734 = vmul.f32 %v731, %v719
      %v735 = vmul.f32 %v732, %v719
      %v736 = vmul.f32 %v733, %v719
      %v737 = vmul.f32 %v734, %v734
      %v738 = vmul.f32 %v735, %v735
      %v739 = vmul.f32 %v736, %v736
      %740 = vadd.xlane.f32.xlu0 %v737
      %v741 = vpop.xlane.xlu0 %740
      %742 = vadd.xlane.f32.xlu0 %v738
      %v743 = vpop.xlane.xlu0 %742
      %v744 = vsel %vm724, %v739, 0.0
      %745 = vadd.xlane.f32.xlu0 %v744
      %v746 = vpop.xlane.xlu0 %745
      %v747 = vmul.f32 %v741, 0.03125
      %v748 = vmul.f32 %v743, 0.03125
      %v749 = vmul.f32 %v746, 0.03125
      %v750 = vadd.f32 %v747, 1e-05
      %v751 = vadd.f32 %v748, 1e-05
      %v752 = vadd.f32 %v749, 1e-05
      %v753 = vrsqrt.pop %v750
      %v754 = vrsqrt.pop %v751
      %v755 = vrsqrt.pop %v752
      %v756 = vmul.f32 %v734, %v753
      %v757 = vmul.f32 %v735, %v754
      %v758 = vmul.f32 %v736, %v755
      %v760 = vlaneseq
      %v761 = vshrl.u32 %v760, 7
      %v762 = vsub.s32 0, %v761
      %v763 = vrot.slane %v713, %v762
      %v765 = vmul.f32 %v756, %v763
      %v766 = vmul.f32 %v757, %v763
      %v767 = vmul.f32 %v758, %v763
      %v769 = vlaneseq
      %v770 = vshrl.u32 %v769, 7
      %v771 = vsub.s32 0, %v770
      %v772 = vrot.slane %v714, %v771
      %v774 = vadd.f32 %v765, %v772
      %v775 = vadd.f32 %v766, %v772
      %v776 = vadd.f32 %v767, %v772
      %v777 = vpack.c.bf16 %v775, %v774
      %v778 = vpack.c.bf16 %v776, %v776
      %v779 = vld [vmem:[%s660] sm:$0xf]
      %v780 = vld [vmem:[%s660 + $0x4] sm:$0xf]
      %v781 = vld [vmem:[%s660 + $0x8] sm:$0xf]
      %v782 = vld [vmem:[%s660 + $0xc] sm:$0xf]
      %v783 = vld [vmem:[%s660 + $0x10] sm:$0xf]
      %v784 = vld [vmem:[%s660 + $0x14] sm:$0xf]
      %v785 = vld [vmem:[%s660 + $0x18] sm:$0xf]
      %v786 = vld [vmem:[%s660 + $0x1c] sm:$0xf]
      %v787 = vld [vmem:[%s660 + $0x20] sm:$0xf]
      %v788 = vld [vmem:[%s660 + $0x24] sm:$0xf]
      %v789 = vld [vmem:[%s660 + $0x28] sm:$0xf]
      %v790 = vld [vmem:[%s660 + $0x2c] sm:$0xf]
      %v791 = vld [vmem:[%s660 + $0x30] sm:$0xf]
      %v792 = vld [vmem:[%s660 + $0x34] sm:$0xf]
      %v793 = vld [vmem:[%s660 + $0x38] sm:$0xf]
      %v794 = vld [vmem:[%s660 + $0x3c] sm:$0xf]
      %v795 = vld [vmem:[%s663] sm:$0x1]
      %v797 = vlaneseq
      %v798 = vshrl.u32 %v797, 7
      %v799 = vsub.s32 0, %v798
      %v800 = vrot.slane %v795, %v799
      %v818 = vunpack.c.l.b16 %v779
      %v819 = vunpack.c.l.b16 %v780
      %v820 = vunpack.c.l.b16 %v781
      %v821 = vunpack.c.l.b16 %v782
      %v822 = vunpack.c.l.b16 %v783
      %v823 = vunpack.c.l.b16 %v784
      %v824 = vunpack.c.l.b16 %v785
      %v825 = vunpack.c.l.b16 %v786
      %v826 = vunpack.c.l.b16 %v787
      %v827 = vunpack.c.l.b16 %v788
      %v828 = vunpack.c.l.b16 %v789
      %v829 = vunpack.c.l.b16 %v790
      %v830 = vunpack.c.l.b16 %v791
      %v831 = vunpack.c.l.b16 %v792
      %v832 = vunpack.c.l.b16 %v793
      %v833 = vunpack.c.l.b16 %v794
      %v834 = vpack.c.b16 %v819, %v818
      %v835 = vpack.c.b16 %v821, %v820
      %v836 = vpack.c.b16 %v823, %v822
      %v837 = vpack.c.b16 %v825, %v824
      %v838 = vpack.c.b16 %v827, %v826
      %v839 = vpack.c.b16 %v829, %v828
      %v840 = vpack.c.b16 %v831, %v830
      %v841 = vpack.c.b16 %v833, %v832
      %850 = vmatprep.subr.bf16.mxu0 0
      %851 = vmatpush1.bf16.msra.mxu0 %v834
      %852 = vmatprep.subr.bf16.mxu0 0
      %853 = vmatpush1.bf16.msra.mxu0 %v835
      %854 = vmatprep.subr.bf16.mxu0 0
      %855 = vmatpush1.bf16.msra.mxu0 %v836
      %856 = vmatprep.subr.bf16.mxu0 0
      %857 = vmatpush1.bf16.msra.mxu0 %v837
      %858 = vmatprep.subr.bf16.mxu0 0
      %859 = vmatpush1.bf16.msra.mxu0 %v838
      %860 = vmatprep.subr.bf16.mxu0 0
      %861 = vmatpush1.bf16.msra.mxu0 %v839
      %862 = vmatprep.subr.bf16.mxu0 0
      %863 = vmatpush1.bf16.msra.mxu0 %v840
      %864 = vmatprep.subr.bf16.mxu0 0
      %865 = vmatpush1.bf16.msra.mxu0 %v841
      %866 = vmatprep.subr.bf16.mxu0 0
      %867 = vmatpush1.bf16.msra.mxu0 0
      %868 = vmatprep.subr.bf16.mxu0 0
      %869 = vmatpush1.bf16.msra.mxu0 0
      %870 = vmatprep.subr.bf16.mxu0 0
      %871 = vmatpush1.bf16.msra.mxu0 0
      %872 = vmatprep.subr.bf16.mxu0 0
      %873 = vmatpush1.bf16.msra.mxu0 0
      %874 = vmatprep.subr.bf16.mxu0 0
      %875 = vmatpush1.bf16.msra.mxu0 0
      %876 = vmatprep.subr.bf16.mxu0 0
      %877 = vmatpush1.bf16.msra.mxu0 0
      %878 = vmatprep.subr.bf16.mxu0 0
      %879 = vmatpush1.bf16.msra.mxu0 0
      %880 = vmatprep.subr.bf16.mxu0 0
      %881 = vmatpush1.bf16.msra.mxu0 0
      %882 = vmatprep.mubr.bf16.mxu0 0
      %883 = vmatmul.mubr.bf16.gmra.mrb[0].mxu0 %v777
      %v884 = vpop.f32.mrb[0].mxu0
      %v885 = vadd.f32 %v800, %v884
      %v886 = vpop.f32.mrb[0].mxu0
      %v887 = vpop.f32.mrb[0].mxu0
      %v888 = vadd.f32 %v800, %v887
      %v889 = vpop.f32.mrb[0].mxu0
      %890 = vmatprep.mubr.bf16.mxu0 0
      %891 = vmatmul.mubr.bf16.gmra.mrb[0].mxu0 %v778
      %v892 = vpop.f32.mrb[0].mxu0
      %v893 = vadd.f32 %v800, %v892
      %v894 = vpop.f32.mrb[0].mxu0
      %v895 = vpop.f32.mrb[0].mxu0
      %v896 = vpop.f32.mrb[0].mxu0
      %897 = vdwg.mxu0
      %v898 = vpack.c.bf16 %v888, %v885
      %v899 = vpack.c.bf16 %v893, %v893
      %902 = vrot.lane.b32.xlu0 %v898, 96
      %v903 = vpop.permute.xlu0 %902
      %904 = vrot.lane.b32.xlu0 %v899, 96
      %v905 = vpop.permute.xlu0 %904
      %vm906 = vcmask 64512
      %v908 = vsel %vm906, %v898, 0
      %v911 = vsel %vm906, %v899, 0
      %v914 = vsel %vm906, %v903, 0
      %v917 = vsel %vm906, %v905, 0
      %919 = vmatprep.subr.bf16.mxu0 0
      %920 = vmatpush1.bf16.xpose.msra.mxu0 %v914
      %921 = vmatprep.subr.bf16.mxu0 0
      %922 = vmatpush1.bf16.xpose.msra.mxu0 %v917
      %923 = vmatprep.subr.bf16.mxu0 0
      %924 = vmatpush1.bf16.xpose.msra.mxu0 0
      %925 = vmatprep.subr.bf16.mxu0 0
      %926 = vmatpush1.bf16.xpose.msra.mxu0 0
      %927 = vmatprep.subr.bf16.mxu0 0
      %928 = vmatpush1.bf16.xpose.msra.mxu0 0
      %929 = vmatprep.subr.bf16.mxu0 0
      %930 = vmatpush1.bf16.xpose.msra.mxu0 0
      %931 = vmatprep.subr.bf16.mxu0 0
      %932 = vmatpush1.bf16.xpose.msra.mxu0 0
      %933 = vmatprep.subr.bf16.mxu0 0
      %934 = vmatpush1.bf16.xpose.msra.mxu0 0
      %935 = vmatprep.subr.bf16.mxu0 0
      %936 = vmatpush1.bf16.xpose.msra.mxu0 0
      %937 = vmatprep.subr.bf16.mxu0 0
      %938 = vmatpush1.bf16.xpose.msra.mxu0 0
      %939 = vmatprep.subr.bf16.mxu0 0
      %940 = vmatpush1.bf16.xpose.msra.mxu0 0
      %941 = vmatprep.subr.bf16.mxu0 0
      %942 = vmatpush1.bf16.xpose.msra.mxu0 0
      %943 = vmatprep.subr.bf16.mxu0 0
      %944 = vmatpush1.bf16.xpose.msra.mxu0 0
      %945 = vmatprep.subr.bf16.mxu0 0
      %946 = vmatpush1.bf16.xpose.msra.mxu0 0
      %947 = vmatprep.subr.bf16.mxu0 0
      %948 = vmatpush1.bf16.xpose.msra.mxu0 0
      %949 = vmatprep.subr.bf16.mxu0 0
      %950 = vmatpush1.bf16.xpose.msra.mxu0 0
      %951 = vmatprep.mubr.bf16.mxu0 0
      %952 = vmatmul.mubr.bf16.gmra.mrb[0].mxu0 %v908
      %v953 = vpop.f32.mrb[0].mxu0
      %v954 = vadd.f32 0.0, %v953
      %v955 = vpop.f32.mrb[0].mxu0
      %v956 = vpop.f32.mrb[0].mxu0
      %v957 = vadd.f32 0.0, %v956
      %v958 = vpop.f32.mrb[0].mxu0
      %959 = vmatprep.mubr.bf16.mxu0 0
      %960 = vmatmul.mubr.bf16.gmra.mrb[0].mxu0 %v911
      %v961 = vpop.f32.mrb[0].mxu0
      %v962 = vadd.f32 0.0, %v961
      %v963 = vpop.f32.mrb[0].mxu0
      %v964 = vpop.f32.mrb[0].mxu0
      %v965 = vpop.f32.mrb[0].mxu0
      %966 = vdwg.mxu0
      %vm967 = vcmask 171008
      %v968 = vsel %vm967, %v954, -inf
      %969 = vmax.xlane.f32.xlu0 %v968
      %v970 = vpop.xlane.xlu0 %969
      %v971 = vsel %vm967, %v957, -inf
      %972 = vmax.xlane.f32.xlu0 %v971
      %v973 = vpop.xlane.xlu0 %972
      %vm974 = vcmask 167936
      %v975 = vsel %vm974, %v962, -inf
      %976 = vmax.xlane.f32.xlu0 %v975
      %v977 = vpop.xlane.xlu0 %976
      %v978 = vsub.f32 %v954, %v970
      %v979 = vsub.f32 %v957, %v973
      %v980 = vsub.f32 %v962, %v977
      %v981 = vmul.f32 %v978, 1.442695
      %v982 = vpow.pop %v981
      %v983 = vmul.f32 %v979, 1.442695
      %v984 = vpow.pop %v983
      %v985 = vmul.f32 %v980, 1.442695
      %v986 = vpow.pop %v985
      %v987 = vsel %vm967, %v982, 0.0
      %988 = vadd.xlane.f32.xlu0 %v987
      %v989 = vpop.xlane.xlu0 %988
      %v990 = vsel %vm967, %v984, 0.0
      %991 = vadd.xlane.f32.xlu0 %v990
      %v992 = vpop.xlane.xlu0 %991
      %v993 = vsel %vm974, %v986, 0.0
      %994 = vadd.xlane.f32.xlu0 %v993
      %v995 = vpop.xlane.xlu0 %994
      %v996 = vrcp.pop %v989
      %v997 = vrcp.pop %v992
      %v998 = vrcp.pop %v995
      %v999 = vmul.f32 %v982, %v996
      %v1000 = vmul.f32 %v984, %v997
      %v1001 = vmul.f32 %v986, %v998
      %v1002 = vpack.c.bf16 %v1000, %v999
      %v1003 = vpack.c.bf16 %v1001, %v1001
      %1004 = vrot.lane.b32.xlu0 %v898, 64
      %v1005 = vpop.permute.xlu0 %1004
      %1006 = vrot.lane.b32.xlu0 %v899, 64
      %v1007 = vpop.permute.xlu0 %1006
      %v1010 = vsel %vm967, %v1002, 0
      %v1013 = vsel %vm967, %v1003, 0
      %vm1015 = vcmask 1041408
      %vm1016 = vcmask 1042432
      %v1017 = vsel %vm1015, 4294967295, 65535
      %v1018 = vsel %vm1016, %v1017, 0
      %v1020 = vand.u32 %v1007, %v1018
      %1022 = vmatprep.subr.bf16.mxu0 0
      %1023 = vmatpush1.bf16.msra.mxu0 %v1005
      %1024 = vmatprep.subr.bf16.mxu0 0
      %1025 = vmatpush1.bf16.msra.mxu0 %v1020
      %1026 = vmatprep.subr.bf16.mxu0 0
      %1027 = vmatpush1.bf16.msra.mxu0 0
      %1028 = vmatprep.subr.bf16.mxu0 0
      %1029 = vmatpush1.bf16.msra.mxu0 0
      %1030 = vmatprep.subr.bf16.mxu0 0
      %1031 = vmatpush1.bf16.msra.mxu0 0
      %1032 = vmatprep.subr.bf16.mxu0 0
      %1033 = vmatpush1.bf16.msra.mxu0 0
      %1034 = vmatprep.subr.bf16.mxu0 0
      %1035 = vmatpush1.bf16.msra.mxu0 0
      %1036 = vmatprep.subr.bf16.mxu0 0
      %1037 = vmatpush1.bf16.msra.mxu0 0
      %1038 = vmatprep.subr.bf16.mxu0 0
      %1039 = vmatpush1.bf16.msra.mxu0 0
      %1040 = vmatprep.subr.bf16.mxu0 0
      %1041 = vmatpush1.bf16.msra.mxu0 0
      %1042 = vmatprep.subr.bf16.mxu0 0
      %1043 = vmatpush1.bf16.msra.mxu0 0
      %1044 = vmatprep.subr.bf16.mxu0 0
      %1045 = vmatpush1.bf16.msra.mxu0 0
      %1046 = vmatprep.subr.bf16.mxu0 0
      %1047 = vmatpush1.bf16.msra.mxu0 0
      %1048 = vmatprep.subr.bf16.mxu0 0
      %1049 = vmatpush1.bf16.msra.mxu0 0
      %1050 = vmatprep.subr.bf16.mxu0 0
      %1051 = vmatpush1.bf16.msra.mxu0 0
      %1052 = vmatprep.subr.bf16.mxu0 0
      %1053 = vmatpush1.bf16.msra.mxu0 0
      %1054 = vmatprep.mubr.bf16.mxu0 0
      %1055 = vmatmul.mubr.bf16.gmra.mrb[0].mxu0 %v1010
      %v1056 = vpop.f32.mrb[0].mxu0
      %v1057 = vadd.f32 0.0, %v1056
      %v1058 = vpop.f32.mrb[0].mxu0
      %v1059 = vpop.f32.mrb[0].mxu0
      %v1060 = vadd.f32 0.0, %v1059
      %v1061 = vpop.f32.mrb[0].mxu0
      %1062 = vmatprep.mubr.bf16.mxu0 0
      %1063 = vmatmul.mubr.bf16.gmra.mrb[0].mxu0 %v1013
      %v1064 = vpop.f32.mrb[0].mxu0
      %v1065 = vadd.f32 0.0, %v1064
      %v1066 = vpop.f32.mrb[0].mxu0
      %v1067 = vpop.f32.mrb[0].mxu0
      %v1068 = vpop.f32.mrb[0].mxu0
      %1069 = vdwg.mxu0
      %v1070 = vpack.c.bf16 %v1060, %v1057
      %v1071 = vpack.c.bf16 %v1065, %v1065
      %v1072 = vld [vmem:[%s668] sm:$0xf]
      %1073 = vrot.lane.b32.xlu0 %v898, 120
      %v1074 = vpop.permute.xlu0 %1073
      %1075 = vrot.lane.b32.xlu0 %v899, 120
      %v1076 = vpop.permute.xlu0 %1075
      %1077 = vrot.lane.b32.xlu0 %v898, 88
      %v1078 = vpop.permute.xlu0 %1077
      %1079 = vrot.lane.b32.xlu0 %v899, 88
      %v1080 = vpop.permute.xlu0 %1079
      %v1082 = vsel %vm906, %v1074, 0
      %v1085 = vsel %vm906, %v1076, 0
      %v1088 = vsel %vm906, %v1078, 0
      %v1091 = vsel %vm906, %v1080, 0
      %1093 = vmatprep.subr.bf16.mxu0 0
      %1094 = vmatpush1.bf16.xpose.msra.mxu0 %v1088
      %1095 = vmatprep.subr.bf16.mxu0 0
      %1096 = vmatpush1.bf16.xpose.msra.mxu0 %v1091
      %1097 = vmatprep.subr.bf16.mxu0 0
      %1098 = vmatpush1.bf16.xpose.msra.mxu0 0
      %1099 = vmatprep.subr.bf16.mxu0 0
      %1100 = vmatpush1.bf16.xpose.msra.mxu0 0
      %1101 = vmatprep.subr.bf16.mxu0 0
      %1102 = vmatpush1.bf16.xpose.msra.mxu0 0
      %1103 = vmatprep.subr.bf16.mxu0 0
      %1104 = vmatpush1.bf16.xpose.msra.mxu0 0
      %1105 = vmatprep.subr.bf16.mxu0 0
      %1106 = vmatpush1.bf16.xpose.msra.mxu0 0
      %1107 = vmatprep.subr.bf16.mxu0 0
      %1108 = vmatpush1.bf16.xpose.msra.mxu0 0
      %1109 = vmatprep.subr.bf16.mxu0 0
      %1110 = vmatpush1.bf16.xpose.msra.mxu0 0
      %1111 = vmatprep.subr.bf16.mxu0 0
      %1112 = vmatpush1.bf16.xpose.msra.mxu0 0
      %1113 = vmatprep.subr.bf16.mxu0 0
      %1114 = vmatpush1.bf16.xpose.msra.mxu0 0
      %1115 = vmatprep.subr.bf16.mxu0 0
      %1116 = vmatpush1.bf16.xpose.msra.mxu0 0
      %1117 = vmatprep.subr.bf16.mxu0 0
      %1118 = vmatpush1.bf16.xpose.msra.mxu0 0
      %1119 = vmatprep.subr.bf16.mxu0 0
      %1120 = vmatpush1.bf16.xpose.msra.mxu0 0
      %1121 = vmatprep.subr.bf16.mxu0 0
      %1122 = vmatpush1.bf16.xpose.msra.mxu0 0
      %1123 = vmatprep.subr.bf16.mxu0 0
      %1124 = vmatpush1.bf16.xpose.msra.mxu0 0
      %1125 = vmatprep.mubr.bf16.mxu0 0
      %1126 = vmatmul.mubr.bf16.gmra.mrb[0].mxu0 %v1082
      %v1127 = vpop.f32.mrb[0].mxu0
      %v1128 = vadd.f32 0.0, %v1127
      %v1129 = vpop.f32.mrb[0].mxu0
      %v1130 = vpop.f32.mrb[0].mxu0
      %v1131 = vadd.f32 0.0, %v1130
      %v1132 = vpop.f32.mrb[0].mxu0
      %1133 = vmatprep.mubr.bf16.mxu0 0
      %1134 = vmatmul.mubr.bf16.gmra.mrb[0].mxu0 %v1085
      %v1135 = vpop.f32.mrb[0].mxu0
      %v1136 = vadd.f32 0.0, %v1135
      %v1137 = vpop.f32.mrb[0].mxu0
      %v1138 = vpop.f32.mrb[0].mxu0
      %v1139 = vpop.f32.mrb[0].mxu0
      %1140 = vdwg.mxu0
      %v1141 = vsel %vm967, %v1128, -inf
      %1142 = vmax.xlane.f32.xlu0 %v1141
      %v1143 = vpop.xlane.xlu0 %1142
      %v1144 = vsel %vm967, %v1131, -inf
      %1145 = vmax.xlane.f32.xlu0 %v1144
      %v1146 = vpop.xlane.xlu0 %1145
      %v1147 = vsel %vm974, %v1136, -inf
      %1148 = vmax.xlane.f32.xlu0 %v1147
      %v1149 = vpop.xlane.xlu0 %1148
      %v1150 = vsub.f32 %v1128, %v1143
      %v1151 = vsub.f32 %v1131, %v1146
      %v1152 = vsub.f32 %v1136, %v1149
      %v1153 = vmul.f32 %v1150, 1.442695
      %v1154 = vpow.pop %v1153
      %v1155 = vmul.f32 %v1151, 1.442695
      %v1156 = vpow.pop %v1155
      %v1157 = vmul.f32 %v1152, 1.442695
      %v1158 = vpow.pop %v1157
      %v1159 = vsel %vm967, %v1154, 0.0
      %1160 = vadd.xlane.f32.xlu0 %v1159
      %v1161 = vpop.xlane.xlu0 %1160
      %v1162 = vsel %vm967, %v1156, 0.0
      %1163 = vadd.xlane.f32.xlu0 %v1162
      %v1164 = vpop.xlane.xlu0 %1163
      %v1165 = vsel %vm974, %v1158, 0.0
      %1166 = vadd.xlane.f32.xlu0 %v1165
      %v1167 = vpop.xlane.xlu0 %1166
      %v1168 = vrcp.pop %v1161
      %v1169 = vrcp.pop %v1164
      %v1170 = vrcp.pop %v1167
      %v1171 = vmul.f32 %v1154, %v1168
      %v1172 = vmul.f32 %v1156, %v1169
      %v1173 = vmul.f32 %v1158, %v1170
      %v1174 = vpack.c.bf16 %v1172, %v1171
      %v1175 = vpack.c.bf16 %v1173, %v1173
      %1176 = vrot.lane.b32.xlu0 %v898, 56
      %v1177 = vpop.permute.xlu0 %1176
      %1178 = vrot.lane.b32.xlu0 %v899, 56
      %v1179 = vpop.permute.xlu0 %1178
      %v1182 = vsel %vm967, %v1174, 0
      %v1185 = vsel %vm967, %v1175, 0
      %v1188 = vand.u32 %v1179, %v1018
      %1190 = vmatprep.subr.bf16.mxu0 0
      %1191 = vmatpush1.bf16.msra.mxu0 %v1177
      %1192 = vmatprep.subr.bf16.mxu0 0
      %1193 = vmatpush1.bf16.msra.mxu0 %v1188
      %1194 = vmatprep.subr.bf16.mxu0 0
      %1195 = vmatpush1.bf16.msra.mxu0 0
      %1196 = vmatprep.subr.bf16.mxu0 0
      %1197 = vmatpush1.bf16.msra.mxu0 0
      %1198 = vmatprep.subr.bf16.mxu0 0
      %1199 = vmatpush1.bf16.msra.mxu0 0
      %1200 = vmatprep.subr.bf16.mxu0 0
      %1201 = vmatpush1.bf16.msra.mxu0 0
      %1202 = vmatprep.subr.bf16.mxu0 0
      %1203 = vmatpush1.bf16.msra.mxu0 0
      %1204 = vmatprep.subr.bf16.mxu0 0
      %1205 = vmatpush1.bf16.msra.mxu0 0
      %1206 = vmatprep.subr.bf16.mxu0 0
      %1207 = vmatpush1.bf16.msra.mxu0 0
      %1208 = vmatprep.subr.bf16.mxu0 0
      %1209 = vmatpush1.bf16.msra.mxu0 0
      %1210 = vmatprep.subr.bf16.mxu0 0
      %1211 = vmatpush1.bf16.msra.mxu0 0
      %1212 = vmatprep.subr.bf16.mxu0 0
      %1213 = vmatpush1.bf16.msra.mxu0 0
      %1214 = vmatprep.subr.bf16.mxu0 0
      %1215 = vmatpush1.bf16.msra.mxu0 0
      %1216 = vmatprep.subr.bf16.mxu0 0
      %1217 = vmatpush1.bf16.msra.mxu0 0
      %1218 = vmatprep.subr.bf16.mxu0 0
      %1219 = vmatpush1.bf16.msra.mxu0 0
      %1220 = vmatprep.subr.bf16.mxu0 0
      %1221 = vmatpush1.bf16.msra.mxu0 0
      %1222 = vmatprep.mubr.bf16.mxu0 0
      %1223 = vmatmul.mubr.bf16.gmra.mrb[0].mxu0 %v1182
      %v1224 = vpop.f32.mrb[0].mxu0
      %v1225 = vadd.f32 0.0, %v1224
      %v1226 = vpop.f32.mrb[0].mxu0
      %v1227 = vpop.f32.mrb[0].mxu0
      %v1228 = vadd.f32 0.0, %v1227
      %v1229 = vpop.f32.mrb[0].mxu0
      %1230 = vmatprep.mubr.bf16.mxu0 0
      %1231 = vmatmul.mubr.bf16.gmra.mrb[0].mxu0 %v1185
      %v1232 = vpop.f32.mrb[0].mxu0
      %v1233 = vadd.f32 0.0, %v1232
      %v1234 = vpop.f32.mrb[0].mxu0
      %v1235 = vpop.f32.mrb[0].mxu0
      %v1236 = vpop.f32.mrb[0].mxu0
      %1237 = vdwg.mxu0
      %v1238 = vpack.c.bf16 %v1228, %v1225
      %v1239 = vpack.c.bf16 %v1233, %v1233
      %v1240 = vld [vmem:[%s668 + $0x4] sm:$0xf]
      %v1242 = vsel %vm906, %v1238, 0
      %v1245 = vsel %vm906, %v1239, 0
      %vm1247 = vcmask 1043456
      %v1249 = vsel %vm1247, %v1240, 0
      %1251 = vmatprep.subr.bf16.mxu0 0
      %1252 = vmatpush1.bf16.msra.mxu0 %v1249
      %1253 = vmatprep.subr.bf16.mxu0 0
      %1254 = vmatpush1.bf16.msra.mxu0 0
      %1255 = vmatprep.subr.bf16.mxu0 0
      %1256 = vmatpush1.bf16.msra.mxu0 0
      %1257 = vmatprep.subr.bf16.mxu0 0
      %1258 = vmatpush1.bf16.msra.mxu0 0
      %1259 = vmatprep.subr.bf16.mxu0 0
      %1260 = vmatpush1.bf16.msra.mxu0 0
      %1261 = vmatprep.subr.bf16.mxu0 0
      %1262 = vmatpush1.bf16.msra.mxu0 0
      %1263 = vmatprep.subr.bf16.mxu0 0
      %1264 = vmatpush1.bf16.msra.mxu0 0
      %1265 = vmatprep.subr.bf16.mxu0 0
      %1266 = vmatpush1.bf16.msra.mxu0 0
      %1267 = vmatprep.subr.bf16.mxu0 0
      %1268 = vmatpush1.bf16.msra.mxu0 0
      %1269 = vmatprep.subr.bf16.mxu0 0
      %1270 = vmatpush1.bf16.msra.mxu0 0
      %1271 = vmatprep.subr.bf16.mxu0 0
      %1272 = vmatpush1.bf16.msra.mxu0 0
      %1273 = vmatprep.subr.bf16.mxu0 0
      %1274 = vmatpush1.bf16.msra.mxu0 0
      %1275 = vmatprep.subr.bf16.mxu0 0
      %1276 = vmatpush1.bf16.msra.mxu0 0
      %1277 = vmatprep.subr.bf16.mxu0 0
      %1278 = vmatpush1.bf16.msra.mxu0 0
      %1279 = vmatprep.subr.bf16.mxu0 0
      %1280 = vmatpush1.bf16.msra.mxu0 0
      %1281 = vmatprep.subr.bf16.mxu0 0
      %1282 = vmatpush1.bf16.msra.mxu0 0
      %1283 = vmatprep.mubr.bf16.mxu0 0
      %1284 = vmatmul.mubr.bf16.gmra.mrb[0].mxu0 %v1242
      %v1285 = vpop.f32.mrb[0].mxu0
      %v1286 = vadd.f32 0.0, %v1285
      %v1287 = vpop.f32.mrb[0].mxu0
      %v1288 = vpop.f32.mrb[0].mxu0
      %v1289 = vadd.f32 0.0, %v1288
      %v1290 = vpop.f32.mrb[0].mxu0
      %1291 = vmatprep.mubr.bf16.mxu0 0
      %1292 = vmatmul.mubr.bf16.gmra.mrb[0].mxu0 %v1245
      %v1293 = vpop.f32.mrb[0].mxu0
      %v1294 = vadd.f32 0.0, %v1293
      %v1295 = vpop.f32.mrb[0].mxu0
      %v1296 = vpop.f32.mrb[0].mxu0
      %v1297 = vpop.f32.mrb[0].mxu0
      %1298 = vdwg.mxu0
      %v1300 = vsel %vm906, %v1070, 0
      %v1303 = vsel %vm906, %v1071, 0
      %v1306 = vsel %vm1247, %v1072, 0
      %1308 = vmatprep.subr.bf16.mxu0 0
      %1309 = vmatpush1.bf16.msra.mxu0 %v1306
      %1310 = vmatprep.subr.bf16.mxu0 0
      %1311 = vmatpush1.bf16.msra.mxu0 0
      %1312 = vmatprep.subr.bf16.mxu0 0
      %1313 = vmatpush1.bf16.msra.mxu0 0
      %1314 = vmatprep.subr.bf16.mxu0 0
      %1315 = vmatpush1.bf16.msra.mxu0 0
      %1316 = vmatprep.subr.bf16.mxu0 0
      %1317 = vmatpush1.bf16.msra.mxu0 0
      %1318 = vmatprep.subr.bf16.mxu0 0
      %1319 = vmatpush1.bf16.msra.mxu0 0
      %1320 = vmatprep.subr.bf16.mxu0 0
      %1321 = vmatpush1.bf16.msra.mxu0 0
      %1322 = vmatprep.subr.bf16.mxu0 0
      %1323 = vmatpush1.bf16.msra.mxu0 0
      %1324 = vmatprep.subr.bf16.mxu0 0
      %1325 = vmatpush1.bf16.msra.mxu0 0
      %1326 = vmatprep.subr.bf16.mxu0 0
      %1327 = vmatpush1.bf16.msra.mxu0 0
      %1328 = vmatprep.subr.bf16.mxu0 0
      %1329 = vmatpush1.bf16.msra.mxu0 0
      %1330 = vmatprep.subr.bf16.mxu0 0
      %1331 = vmatpush1.bf16.msra.mxu0 0
      %1332 = vmatprep.subr.bf16.mxu0 0
      %1333 = vmatpush1.bf16.msra.mxu0 0
      %1334 = vmatprep.subr.bf16.mxu0 0
      %1335 = vmatpush1.bf16.msra.mxu0 0
      %1336 = vmatprep.subr.bf16.mxu0 0
      %1337 = vmatpush1.bf16.msra.mxu0 0
      %1338 = vmatprep.subr.bf16.mxu0 0
      %1339 = vmatpush1.bf16.msra.mxu0 0
      %1340 = vmatprep.mubr.bf16.mxu0 0
      %1341 = vmatmul.mubr.bf16.gmra.mrb[0].mxu0 %v1300
      %v1342 = vpop.f32.mrb[0].mxu0
      %v1343 = vadd.f32 %v1286, %v1342
      %v1344 = vpop.f32.mrb[0].mxu0
      %v1345 = vpop.f32.mrb[0].mxu0
      %v1346 = vadd.f32 %v1289, %v1345
      %v1347 = vpop.f32.mrb[0].mxu0
      %1348 = vmatprep.mubr.bf16.mxu0 0
      %1349 = vmatmul.mubr.bf16.gmra.mrb[0].mxu0 %v1303
      %v1350 = vpop.f32.mrb[0].mxu0
      %v1351 = vadd.f32 %v1294, %v1350
      %v1352 = vpop.f32.mrb[0].mxu0
      %v1353 = vpop.f32.mrb[0].mxu0
      %v1354 = vpop.f32.mrb[0].mxu0
      %1355 = vdwg.mxu0
      %1356 = vrot.lane.b32.xlu0 %v898, 112
      %v1357 = vpop.permute.xlu0 %1356
      %1358 = vrot.lane.b32.xlu0 %v899, 112
      %v1359 = vpop.permute.xlu0 %1358
      %1360 = vrot.lane.b32.xlu0 %v898, 80
      %v1361 = vpop.permute.xlu0 %1360
      %1362 = vrot.lane.b32.xlu0 %v899, 80
      %v1363 = vpop.permute.xlu0 %1362
      %v1365 = vsel %vm906, %v1357, 0
      %v1368 = vsel %vm906, %v1359, 0
      %v1371 = vsel %vm906, %v1361, 0
      %v1374 = vsel %vm906, %v1363, 0
      %1376 = vmatprep.subr.bf16.mxu0 0
      %1377 = vmatpush1.bf16.xpose.msra.mxu0 %v1371
      %1378 = vmatprep.subr.bf16.mxu0 0
      %1379 = vmatpush1.bf16.xpose.msra.mxu0 %v1374
      %1380 = vmatprep.subr.bf16.mxu0 0
      %1381 = vmatpush1.bf16.xpose.msra.mxu0 0
      %1382 = vmatprep.subr.bf16.mxu0 0
      %1383 = vmatpush1.bf16.xpose.msra.mxu0 0
      %1384 = vmatprep.subr.bf16.mxu0 0
      %1385 = vmatpush1.bf16.xpose.msra.mxu0 0
      %1386 = vmatprep.subr.bf16.mxu0 0
      %1387 = vmatpush1.bf16.xpose.msra.mxu0 0
      %1388 = vmatprep.subr.bf16.mxu0 0
      %1389 = vmatpush1.bf16.xpose.msra.mxu0 0
      %1390 = vmatprep.subr.bf16.mxu0 0
      %1391 = vmatpush1.bf16.xpose.msra.mxu0 0
      %1392 = vmatprep.subr.bf16.mxu0 0
      %1393 = vmatpush1.bf16.xpose.msra.mxu0 0
      %1394 = vmatprep.subr.bf16.mxu0 0
      %1395 = vmatpush1.bf16.xpose.msra.mxu0 0
      %1396 = vmatprep.subr.bf16.mxu0 0
      %1397 = vmatpush1.bf16.xpose.msra.mxu0 0
      %1398 = vmatprep.subr.bf16.mxu0 0
      %1399 = vmatpush1.bf16.xpose.msra.mxu0 0
      %1400 = vmatprep.subr.bf16.mxu0 0
      %1401 = vmatpush1.bf16.xpose.msra.mxu0 0
      %1402 = vmatprep.subr.bf16.mxu0 0
      %1403 = vmatpush1.bf16.xpose.msra.mxu0 0
      %1404 = vmatprep.subr.bf16.mxu0 0
      %1405 = vmatpush1.bf16.xpose.msra.mxu0 0
      %1406 = vmatprep.subr.bf16.mxu0 0
      %1407 = vmatpush1.bf16.xpose.msra.mxu0 0
      %1408 = vmatprep.mubr.bf16.mxu0 0
      %1409 = vmatmul.mubr.bf16.gmra.mrb[0].mxu0 %v1365
      %v1410 = vpop.f32.mrb[0].mxu0
      %v1411 = vadd.f32 0.0, %v1410
      %v1412 = vpop.f32.mrb[0].mxu0
      %v1413 = vpop.f32.mrb[0].mxu0
      %v1414 = vadd.f32 0.0, %v1413
      %v1415 = vpop.f32.mrb[0].mxu0
      %1416 = vmatprep.mubr.bf16.mxu0 0
      %1417 = vmatmul.mubr.bf16.gmra.mrb[0].mxu0 %v1368
      %v1418 = vpop.f32.mrb[0].mxu0
      %v1419 = vadd.f32 0.0, %v1418
      %v1420 = vpop.f32.mrb[0].mxu0
      %v1421 = vpop.f32.mrb[0].mxu0
      %v1422 = vpop.f32.mrb[0].mxu0
      %1423 = vdwg.mxu0
      %v1424 = vsel %vm967, %v1411, -inf
      %1425 = vmax.xlane.f32.xlu0 %v1424
      %v1426 = vpop.xlane.xlu0 %1425
      %v1427 = vsel %vm967, %v1414, -inf
      %1428 = vmax.xlane.f32.xlu0 %v1427
      %v1429 = vpop.xlane.xlu0 %1428
      %v1430 = vsel %vm974, %v1419, -inf
      %1431 = vmax.xlane.f32.xlu0 %v1430
      %v1432 = vpop.xlane.xlu0 %1431
      %v1433 = vsub.f32 %v1411, %v1426
      %v1434 = vsub.f32 %v1414, %v1429
      %v1435 = vsub.f32 %v1419, %v1432
      %v1436 = vmul.f32 %v1433, 1.442695
      %v1437 = vpow.pop %v1436
      %v1438 = vmul.f32 %v1434, 1.442695
      %v1439 = vpow.pop %v1438
      %v1440 = vmul.f32 %v1435, 1.442695
      %v1441 = vpow.pop %v1440
      %v1442 = vsel %vm967, %v1437, 0.0
      %1443 = vadd.xlane.f32.xlu0 %v1442
      %v1444 = vpop.xlane.xlu0 %1443
      %v1445 = vsel %vm967, %v1439, 0.0
      %1446 = vadd.xlane.f32.xlu0 %v1445
      %v1447 = vpop.xlane.xlu0 %1446
      %v1448 = vsel %vm974, %v1441, 0.0
      %1449 = vadd.xlane.f32.xlu0 %v1448
      %v1450 = vpop.xlane.xlu0 %1449
      %v1451 = vrcp.pop %v1444
      %v1452 = vrcp.pop %v1447
      %v1453 = vrcp.pop %v1450
      %v1454 = vmul.f32 %v1437, %v1451
      %v1455 = vmul.f32 %v1439, %v1452
      %v1456 = vmul.f32 %v1441, %v1453
      %v1457 = vpack.c.bf16 %v1455, %v1454
      %v1458 = vpack.c.bf16 %v1456, %v1456
      %1459 = vrot.lane.b32.xlu0 %v898, 48
      %v1460 = vpop.permute.xlu0 %1459
      %1461 = vrot.lane.b32.xlu0 %v899, 48
      %v1462 = vpop.permute.xlu0 %1461
      %v1465 = vsel %vm967, %v1457, 0
      %v1468 = vsel %vm967, %v1458, 0
      %v1471 = vand.u32 %v1462, %v1018
      %1473 = vmatprep.subr.bf16.mxu0 0
      %1474 = vmatpush1.bf16.msra.mxu0 %v1460
      %1475 = vmatprep.subr.bf16.mxu0 0
      %1476 = vmatpush1.bf16.msra.mxu0 %v1471
      %1477 = vmatprep.subr.bf16.mxu0 0
      %1478 = vmatpush1.bf16.msra.mxu0 0
      %1479 = vmatprep.subr.bf16.mxu0 0
      %1480 = vmatpush1.bf16.msra.mxu0 0
      %1481 = vmatprep.subr.bf16.mxu0 0
      %1482 = vmatpush1.bf16.msra.mxu0 0
      %1483 = vmatprep.subr.bf16.mxu0 0
      %1484 = vmatpush1.bf16.msra.mxu0 0
      %1485 = vmatprep.subr.bf16.mxu0 0
      %1486 = vmatpush1.bf16.msra.mxu0 0
      %1487 = vmatprep.subr.bf16.mxu0 0
      %1488 = vmatpush1.bf16.msra.mxu0 0
      %1489 = vmatprep.subr.bf16.mxu0 0
      %1490 = vmatpush1.bf16.msra.mxu0 0
      %1491 = vmatprep.subr.bf16.mxu0 0
      %1492 = vmatpush1.bf16.msra.mxu0 0
      %1493 = vmatprep.subr.bf16.mxu0 0
      %1494 = vmatpush1.bf16.msra.mxu0 0
      %1495 = vmatprep.subr.bf16.mxu0 0
      %1496 = vmatpush1.bf16.msra.mxu0 0
      %1497 = vmatprep.subr.bf16.mxu0 0
      %1498 = vmatpush1.bf16.msra.mxu0 0
      %1499 = vmatprep.subr.bf16.mxu0 0
      %1500 = vmatpush1.bf16.msra.mxu0 0
      %1501 = vmatprep.subr.bf16.mxu0 0
      %1502 = vmatpush1.bf16.msra.mxu0 0
      %1503 = vmatprep.subr.bf16.mxu0 0
      %1504 = vmatpush1.bf16.msra.mxu0 0
      %1505 = vmatprep.mubr.bf16.mxu0 0
      %1506 = vmatmul.mubr.bf16.gmra.mrb[0].mxu0 %v1465
      %v1507 = vpop.f32.mrb[0].mxu0
      %v1508 = vadd.f32 0.0, %v1507
      %v1509 = vpop.f32.mrb[0].mxu0
      %v1510 = vpop.f32.mrb[0].mxu0
      %v1511 = vadd.f32 0.0, %v1510
      %v1512 = vpop.f32.mrb[0].mxu0
      %1513 = vmatprep.mubr.bf16.mxu0 0
      %1514 = vmatmul.mubr.bf16.gmra.mrb[0].mxu0 %v1468
      %v1515 = vpop.f32.mrb[0].mxu0
      %v1516 = vadd.f32 0.0, %v1515
      %v1517 = vpop.f32.mrb[0].mxu0
      %v1518 = vpop.f32.mrb[0].mxu0
      %v1519 = vpop.f32.mrb[0].mxu0
      %1520 = vdwg.mxu0
      %v1521 = vpack.c.bf16 %v1511, %v1508
      %v1522 = vpack.c.bf16 %v1516, %v1516
      %v1523 = vld [vmem:[%s668 + $0x8] sm:$0xf]
      %v1525 = vsel %vm906, %v1521, 0
      %v1528 = vsel %vm906, %v1522, 0
      %v1531 = vsel %vm1247, %v1523, 0
      %1533 = vmatprep.subr.bf16.mxu0 0
      %1534 = vmatpush1.bf16.msra.mxu0 %v1531
      %1535 = vmatprep.subr.bf16.mxu0 0
      %1536 = vmatpush1.bf16.msra.mxu0 0
      %1537 = vmatprep.subr.bf16.mxu0 0
      %1538 = vmatpush1.bf16.msra.mxu0 0
      %1539 = vmatprep.subr.bf16.mxu0 0
      %1540 = vmatpush1.bf16.msra.mxu0 0
      %1541 = vmatprep.subr.bf16.mxu0 0
      %1542 = vmatpush1.bf16.msra.mxu0 0
      %1543 = vmatprep.subr.bf16.mxu0 0
      %1544 = vmatpush1.bf16.msra.mxu0 0
      %1545 = vmatprep.subr.bf16.mxu0 0
      %1546 = vmatpush1.bf16.msra.mxu0 0
      %1547 = vmatprep.subr.bf16.mxu0 0
      %1548 = vmatpush1.bf16.msra.mxu0 0
      %1549 = vmatprep.subr.bf16.mxu0 0
      %1550 = vmatpush1.bf16.msra.mxu0 0
      %1551 = vmatprep.subr.bf16.mxu0 0
      %1552 = vmatpush1.bf16.msra.mxu0 0
      %1553 = vmatprep.subr.bf16.mxu0 0
      %1554 = vmatpush1.bf16.msra.mxu0 0
      %1555 = vmatprep.subr.bf16.mxu0 0
      %1556 = vmatpush1.bf16.msra.mxu0 0
      %1557 = vmatprep.subr.bf16.mxu0 0
      %1558 = vmatpush1.bf16.msra.mxu0 0
      %1559 = vmatprep.subr.bf16.mxu0 0
      %1560 = vmatpush1.bf16.msra.mxu0 0
      %1561 = vmatprep.subr.bf16.mxu0 0
      %1562 = vmatpush1.bf16.msra.mxu0 0
      %1563 = vmatprep.subr.bf16.mxu0 0
      %1564 = vmatpush1.bf16.msra.mxu0 0
      %1565 = vmatprep.mubr.bf16.mxu0 0
      %1566 = vmatmul.mubr.bf16.gmra.mrb[0].mxu0 %v1525
      %v1567 = vpop.f32.mrb[0].mxu0
      %v1568 = vadd.f32 0.0, %v1567
      %v1569 = vpop.f32.mrb[0].mxu0
      %v1570 = vpop.f32.mrb[0].mxu0
      %v1571 = vadd.f32 0.0, %v1570
      %v1572 = vpop.f32.mrb[0].mxu0
      %1573 = vmatprep.mubr.bf16.mxu0 0
      %1574 = vmatmul.mubr.bf16.gmra.mrb[0].mxu0 %v1528
      %v1575 = vpop.f32.mrb[0].mxu0
      %v1576 = vadd.f32 0.0, %v1575
      %v1577 = vpop.f32.mrb[0].mxu0
      %v1578 = vpop.f32.mrb[0].mxu0
      %v1579 = vpop.f32.mrb[0].mxu0
      %1580 = vdwg.mxu0
      %v1581 = vadd.f32 %v1343, %v1568
      %v1582 = vadd.f32 %v1346, %v1571
      %v1583 = vadd.f32 %v1351, %v1576
      %1584 = vrot.lane.b32.xlu0 %v898, 104
      %v1585 = vpop.permute.xlu0 %1584
      %1586 = vrot.lane.b32.xlu0 %v899, 104
      %v1587 = vpop.permute.xlu0 %1586
      %1588 = vrot.lane.b32.xlu0 %v898, 72
      %v1589 = vpop.permute.xlu0 %1588
      %1590 = vrot.lane.b32.xlu0 %v899, 72
      %v1591 = vpop.permute.xlu0 %1590
      %v1593 = vsel %vm906, %v1585, 0
      %v1596 = vsel %vm906, %v1587, 0
      %v1599 = vsel %vm906, %v1589, 0
      %v1602 = vsel %vm906, %v1591, 0
      %1604 = vmatprep.subr.bf16.mxu0 0
      %1605 = vmatpush1.bf16.xpose.msra.mxu0 %v1599
      %1606 = vmatprep.subr.bf16.mxu0 0
      %1607 = vmatpush1.bf16.xpose.msra.mxu0 %v1602
      %1608 = vmatprep.subr.bf16.mxu0 0
      %1609 = vmatpush1.bf16.xpose.msra.mxu0 0
      %1610 = vmatprep.subr.bf16.mxu0 0
      %1611 = vmatpush1.bf16.xpose.msra.mxu0 0
      %1612 = vmatprep.subr.bf16.mxu0 0
      %1613 = vmatpush1.bf16.xpose.msra.mxu0 0
      %1614 = vmatprep.subr.bf16.mxu0 0
      %1615 = vmatpush1.bf16.xpose.msra.mxu0 0
      %1616 = vmatprep.subr.bf16.mxu0 0
      %1617 = vmatpush1.bf16.xpose.msra.mxu0 0
      %1618 = vmatprep.subr.bf16.mxu0 0
      %1619 = vmatpush1.bf16.xpose.msra.mxu0 0
      %1620 = vmatprep.subr.bf16.mxu0 0
      %1621 = vmatpush1.bf16.xpose.msra.mxu0 0
      %1622 = vmatprep.subr.bf16.mxu0 0
      %1623 = vmatpush1.bf16.xpose.msra.mxu0 0
      %1624 = vmatprep.subr.bf16.mxu0 0
      %1625 = vmatpush1.bf16.xpose.msra.mxu0 0
      %1626 = vmatprep.subr.bf16.mxu0 0
      %1627 = vmatpush1.bf16.xpose.msra.mxu0 0
      %1628 = vmatprep.subr.bf16.mxu0 0
      %1629 = vmatpush1.bf16.xpose.msra.mxu0 0
      %1630 = vmatprep.subr.bf16.mxu0 0
      %1631 = vmatpush1.bf16.xpose.msra.mxu0 0
      %1632 = vmatprep.subr.bf16.mxu0 0
      %1633 = vmatpush1.bf16.xpose.msra.mxu0 0
      %1634 = vmatprep.subr.bf16.mxu0 0
      %1635 = vmatpush1.bf16.xpose.msra.mxu0 0
      %1636 = vmatprep.mubr.bf16.mxu0 0
      %1637 = vmatmul.mubr.bf16.gmra.mrb[0].mxu0 %v1593
      %v1638 = vpop.f32.mrb[0].mxu0
      %v1639 = vadd.f32 0.0, %v1638
      %v1640 = vpop.f32.mrb[0].mxu0
      %v1641 = vpop.f32.mrb[0].mxu0
      %v1642 = vadd.f32 0.0, %v1641
      %v1643 = vpop.f32.mrb[0].mxu0
      %1644 = vmatprep.mubr.bf16.mxu0 0
      %1645 = vmatmul.mubr.bf16.gmra.mrb[0].mxu0 %v1596
      %v1646 = vpop.f32.mrb[0].mxu0
      %v1647 = vadd.f32 0.0, %v1646
      %v1648 = vpop.f32.mrb[0].mxu0
      %v1649 = vpop.f32.mrb[0].mxu0
      %v1650 = vpop.f32.mrb[0].mxu0
      %1651 = vdwg.mxu0
      %v1652 = vsel %vm967, %v1639, -inf
      %1653 = vmax.xlane.f32.xlu0 %v1652
      %v1654 = vpop.xlane.xlu0 %1653
      %v1655 = vsel %vm967, %v1642, -inf
      %1656 = vmax.xlane.f32.xlu0 %v1655
      %v1657 = vpop.xlane.xlu0 %1656
      %v1658 = vsel %vm974, %v1647, -inf
      %1659 = vmax.xlane.f32.xlu0 %v1658
      %v1660 = vpop.xlane.xlu0 %1659
      %v1661 = vsub.f32 %v1639, %v1654
      %v1662 = vsub.f32 %v1642, %v1657
      %v1663 = vsub.f32 %v1647, %v1660
      %v1664 = vmul.f32 %v1661, 1.442695
      %v1665 = vpow.pop %v1664
      %v1666 = vmul.f32 %v1662, 1.442695
      %v1667 = vpow.pop %v1666
      %v1668 = vmul.f32 %v1663, 1.442695
      %v1669 = vpow.pop %v1668
      %v1670 = vsel %vm967, %v1665, 0.0
      %1671 = vadd.xlane.f32.xlu0 %v1670
      %v1672 = vpop.xlane.xlu0 %1671
      %v1673 = vsel %vm967, %v1667, 0.0
      %1674 = vadd.xlane.f32.xlu0 %v1673
      %v1675 = vpop.xlane.xlu0 %1674
      %v1676 = vsel %vm974, %v1669, 0.0
      %1677 = vadd.xlane.f32.xlu0 %v1676
      %v1678 = vpop.xlane.xlu0 %1677
      %v1679 = vrcp.pop %v1672
      %v1680 = vrcp.pop %v1675
      %v1681 = vrcp.pop %v1678
      %v1682 = vmul.f32 %v1665, %v1679
      %v1683 = vmul.f32 %v1667, %v1680
      %v1684 = vmul.f32 %v1669, %v1681
      %v1685 = vpack.c.bf16 %v1683, %v1682
      %v1686 = vpack.c.bf16 %v1684, %v1684
      %1687 = vrot.lane.b32.xlu0 %v898, 40
      %v1688 = vpop.permute.xlu0 %1687
      %1689 = vrot.lane.b32.xlu0 %v899, 40
      %v1690 = vpop.permute.xlu0 %1689
      %v1693 = vsel %vm967, %v1685, 0
      %v1696 = vsel %vm967, %v1686, 0
      %v1699 = vand.u32 %v1690, %v1018
      %1701 = vmatprep.subr.bf16.mxu0 0
      %1702 = vmatpush1.bf16.msra.mxu0 %v1688
      %1703 = vmatprep.subr.bf16.mxu0 0
      %1704 = vmatpush1.bf16.msra.mxu0 %v1699
      %1705 = vmatprep.subr.bf16.mxu0 0
      %1706 = vmatpush1.bf16.msra.mxu0 0
      %1707 = vmatprep.subr.bf16.mxu0 0
      %1708 = vmatpush1.bf16.msra.mxu0 0
      %1709 = vmatprep.subr.bf16.mxu0 0
      %1710 = vmatpush1.bf16.msra.mxu0 0
      %1711 = vmatprep.subr.bf16.mxu0 0
      %1712 = vmatpush1.bf16.msra.mxu0 0
      %1713 = vmatprep.subr.bf16.mxu0 0
      %1714 = vmatpush1.bf16.msra.mxu0 0
      %1715 = vmatprep.subr.bf16.mxu0 0
      %1716 = vmatpush1.bf16.msra.mxu0 0
      %1717 = vmatprep.subr.bf16.mxu0 0
      %1718 = vmatpush1.bf16.msra.mxu0 0
      %1719 = vmatprep.subr.bf16.mxu0 0
      %1720 = vmatpush1.bf16.msra.mxu0 0
      %1721 = vmatprep.subr.bf16.mxu0 0
      %1722 = vmatpush1.bf16.msra.mxu0 0
      %1723 = vmatprep.subr.bf16.mxu0 0
      %1724 = vmatpush1.bf16.msra.mxu0 0
      %1725 = vmatprep.subr.bf16.mxu0 0
      %1726 = vmatpush1.bf16.msra.mxu0 0
      %1727 = vmatprep.subr.bf16.mxu0 0
      %1728 = vmatpush1.bf16.msra.mxu0 0
      %1729 = vmatprep.subr.bf16.mxu0 0
      %1730 = vmatpush1.bf16.msra.mxu0 0
      %1731 = vmatprep.subr.bf16.mxu0 0
      %1732 = vmatpush1.bf16.msra.mxu0 0
      %1733 = vmatprep.mubr.bf16.mxu0 0
      %1734 = vmatmul.mubr.bf16.gmra.mrb[0].mxu0 %v1693
      %v1735 = vpop.f32.mrb[0].mxu0
      %v1736 = vadd.f32 0.0, %v1735
      %v1737 = vpop.f32.mrb[0].mxu0
      %v1738 = vpop.f32.mrb[0].mxu0
      %v1739 = vadd.f32 0.0, %v1738
      %v1740 = vpop.f32.mrb[0].mxu0
      %1741 = vmatprep.mubr.bf16.mxu0 0
      %1742 = vmatmul.mubr.bf16.gmra.mrb[0].mxu0 %v1696
      %v1743 = vpop.f32.mrb[0].mxu0
      %v1744 = vadd.f32 0.0, %v1743
      %v1745 = vpop.f32.mrb[0].mxu0
      %v1746 = vpop.f32.mrb[0].mxu0
      %v1747 = vpop.f32.mrb[0].mxu0
      %1748 = vdwg.mxu0
      %v1749 = vpack.c.bf16 %v1739, %v1736
      %v1750 = vpack.c.bf16 %v1744, %v1744
      %v1751 = vld [vmem:[%s668 + $0xc] sm:$0xf]
      %v1753 = vsel %vm906, %v1749, 0
      %v1756 = vsel %vm906, %v1750, 0
      %v1759 = vsel %vm1247, %v1751, 0
      %1761 = vmatprep.subr.bf16.mxu0 0
      %1762 = vmatpush1.bf16.msra.mxu0 %v1759
      %1763 = vmatprep.subr.bf16.mxu0 0
      %1764 = vmatpush1.bf16.msra.mxu0 0
      %1765 = vmatprep.subr.bf16.mxu0 0
      %1766 = vmatpush1.bf16.msra.mxu0 0
      %1767 = vmatprep.subr.bf16.mxu0 0
      %1768 = vmatpush1.bf16.msra.mxu0 0
      %1769 = vmatprep.subr.bf16.mxu0 0
      %1770 = vmatpush1.bf16.msra.mxu0 0
      %1771 = vmatprep.subr.bf16.mxu0 0
      %1772 = vmatpush1.bf16.msra.mxu0 0
      %1773 = vmatprep.subr.bf16.mxu0 0
      %1774 = vmatpush1.bf16.msra.mxu0 0
      %1775 = vmatprep.subr.bf16.mxu0 0
      %1776 = vmatpush1.bf16.msra.mxu0 0
      %1777 = vmatprep.subr.bf16.mxu0 0
      %1778 = vmatpush1.bf16.msra.mxu0 0
      %1779 = vmatprep.subr.bf16.mxu0 0
      %1780 = vmatpush1.bf16.msra.mxu0 0
      %1781 = vmatprep.subr.bf16.mxu0 0
      %1782 = vmatpush1.bf16.msra.mxu0 0
      %1783 = vmatprep.subr.bf16.mxu0 0
      %1784 = vmatpush1.bf16.msra.mxu0 0
      %1785 = vmatprep.subr.bf16.mxu0 0
      %1786 = vmatpush1.bf16.msra.mxu0 0
      %1787 = vmatprep.subr.bf16.mxu0 0
      %1788 = vmatpush1.bf16.msra.mxu0 0
      %1789 = vmatprep.subr.bf16.mxu0 0
      %1790 = vmatpush1.bf16.msra.mxu0 0
      %1791 = vmatprep.subr.bf16.mxu0 0
      %1792 = vmatpush1.bf16.msra.mxu0 0
      %1793 = vmatprep.mubr.bf16.mxu0 0
      %1794 = vmatmul.mubr.bf16.gmra.mrb[0].mxu0 %v1753
      %v1795 = vpop.f32.mrb[0].mxu0
      %v1796 = vadd.f32 0.0, %v1795
      %v1797 = vpop.f32.mrb[0].mxu0
      %v1798 = vpop.f32.mrb[0].mxu0
      %v1799 = vadd.f32 0.0, %v1798
      %v1800 = vpop.f32.mrb[0].mxu0
      %1801 = vmatprep.mubr.bf16.mxu0 0
      %1802 = vmatmul.mubr.bf16.gmra.mrb[0].mxu0 %v1756
      %v1803 = vpop.f32.mrb[0].mxu0
      %v1804 = vadd.f32 0.0, %v1803
      %v1805 = vpop.f32.mrb[0].mxu0
      %v1806 = vpop.f32.mrb[0].mxu0
      %v1807 = vpop.f32.mrb[0].mxu0
      %1808 = vdwg.mxu0
      %v1809 = vadd.f32 %v1581, %v1796
      %v1810 = vadd.f32 %v1582, %v1799
      %v1811 = vadd.f32 %v1583, %v1804
      %v1812 = vadd.f32 %v710, %v1809
      %v1813 = vadd.f32 %v711, %v1810
      %v1814 = vadd.f32 %v712, %v1811
      %v1815 = vld [vmem:[%s671] sm:$0x1]
      %v1817 = vlaneseq
      %v1818 = vshrl.u32 %v1817, 7
      %v1819 = vsub.s32 0, %v1818
      %v1820 = vrot.slane %v1815, %v1819
      %v1822 = vadd.f32 %v1812, %v1820
      %v1823 = vadd.f32 %v1813, %v1820
      %v1824 = vadd.f32 %v1814, %v1820
      %v1825 = vld [vmem:[%s674] sm:$0x1]
      %v1826 = vld [vmem:[%s677] sm:$0x1]
      %1827 = vadd.xlane.f32.xlu0 %v1822
      %v1828 = vpop.xlane.xlu0 %1827
      %1829 = vadd.xlane.f32.xlu0 %v1823
      %v1830 = vpop.xlane.xlu0 %1829
      %v1831 = vsel %vm724, %v1824, 0.0
      %1832 = vadd.xlane.f32.xlu0 %v1831
      %v1833 = vpop.xlane.xlu0 %1832
      %v1834 = vmul.f32 %v1828, 0.03125
      %v1835 = vmul.f32 %v1830, 0.03125
      %v1836 = vmul.f32 %v1833, 0.03125
      %v1837 = vsub.f32 %v1822, %v1834
      %v1838 = vsub.f32 %v1823, %v1835
      %v1839 = vsub.f32 %v1824, %v1836
      %v1840 = vmul.f32 %v1837, %v719
      %v1841 = vmul.f32 %v1838, %v719
      %v1842 = vmul.f32 %v1839, %v719
      %v1843 = vmul.f32 %v1840, %v1840
      %v1844 = vmul.f32 %v1841, %v1841
      %v1845 = vmul.f32 %v1842, %v1842
      %1846 = vadd.xlane.f32.xlu0 %v1843
      %v1847 = vpop.xlane.xlu0 %1846
      %1848 = vadd.xlane.f32.xlu0 %v1844
      %v1849 = vpop.xlane.xlu0 %1848
      %v1850 = vsel %vm724, %v1845, 0.0
      %1851 = vadd.xlane.f32.xlu0 %v1850
      %v1852 = vpop.xlane.xlu0 %1851
      %v1853 = vmul.f32 %v1847, 0.03125
      %v1854 = vmul.f32 %v1849, 0.03125
      %v1855 = vmul.f32 %v1852, 0.03125
      %v1856 = vadd.f32 %v1853, 1e-05
      %v1857 = vadd.f32 %v1854, 1e-05
      %v1858 = vadd.f32 %v1855, 1e-05
      %v1859 = vrsqrt.pop %v1856
      %v1860 = vrsqrt.pop %v1857
      %v1861 = vrsqrt.pop %v1858
      %v1862 = vmul.f32 %v1840, %v1859
      %v1863 = vmul.f32 %v1841, %v1860
      %v1864 = vmul.f32 %v1842, %v1861
      %v1866 = vlaneseq
      %v1867 = vshrl.u32 %v1866, 7
      %v1868 = vsub.s32 0, %v1867
      %v1869 = vrot.slane %v1825, %v1868
      %v1871 = vmul.f32 %v1862, %v1869
      %v1872 = vmul.f32 %v1863, %v1869
      %v1873 = vmul.f32 %v1864, %v1869
      %v1875 = vlaneseq
      %v1876 = vshrl.u32 %v1875, 7
      %v1877 = vsub.s32 0, %v1876
      %v1878 = vrot.slane %v1826, %v1877
      %v1880 = vadd.f32 %v1871, %v1878
      %v1881 = vadd.f32 %v1872, %v1878
      %v1882 = vadd.f32 %v1873, %v1878
      %v1883 = vpack.c.bf16 %v1881, %v1880
      %v1884 = vpack.c.bf16 %v1882, %v1882
      %v1885 = vld [vmem:[%s682] sm:$0xf]
      %v1886 = vld [vmem:[%s682 + $0x4] sm:$0xf]
      %v1887 = vld [vmem:[%s682 + $0x8] sm:$0xf]
      %v1888 = vld [vmem:[%s682 + $0xc] sm:$0xf]
      %v1889 = vld [vmem:[%s682 + $0x10] sm:$0xf]
      %v1890 = vld [vmem:[%s682 + $0x14] sm:$0xf]
      %v1891 = vld [vmem:[%s682 + $0x18] sm:$0xf]
      %v1892 = vld [vmem:[%s682 + $0x1c] sm:$0xf]
      %v1893 = vld [vmem:[%s682 + $0x20] sm:$0xf]
      %v1894 = vld [vmem:[%s682 + $0x24] sm:$0xf]
      %v1895 = vld [vmem:[%s682 + $0x28] sm:$0xf]
      %v1896 = vld [vmem:[%s682 + $0x2c] sm:$0xf]
      %v1897 = vld [vmem:[%s682 + $0x30] sm:$0xf]
      %v1898 = vld [vmem:[%s682 + $0x34] sm:$0xf]
      %v1899 = vld [vmem:[%s682 + $0x38] sm:$0xf]
      %v1900 = vld [vmem:[%s682 + $0x3c] sm:$0xf]
      %v1901 = vld [vmem:[%s685] sm:$0x1]
      %v1903 = vlaneseq
      %v1904 = vshrl.u32 %v1903, 7
      %v1905 = vsub.s32 0, %v1904
      %v1906 = vrot.slane %v1901, %v1905
      %v1924 = vunpack.c.l.b16 %v1885
      %v1925 = vunpack.c.l.b16 %v1886
      %v1926 = vunpack.c.l.b16 %v1887
      %v1927 = vunpack.c.l.b16 %v1888
      %v1928 = vunpack.c.l.b16 %v1889
      %v1929 = vunpack.c.l.b16 %v1890
      %v1930 = vunpack.c.l.b16 %v1891
      %v1931 = vunpack.c.l.b16 %v1892
      %v1932 = vunpack.c.l.b16 %v1893
      %v1933 = vunpack.c.l.b16 %v1894
      %v1934 = vunpack.c.l.b16 %v1895
      %v1935 = vunpack.c.l.b16 %v1896
      %v1936 = vunpack.c.l.b16 %v1897
      %v1937 = vunpack.c.l.b16 %v1898
      %v1938 = vunpack.c.l.b16 %v1899
      %v1939 = vunpack.c.l.b16 %v1900
      %v1940 = vpack.c.b16 %v1925, %v1924
      %v1941 = vpack.c.b16 %v1927, %v1926
      %v1942 = vpack.c.b16 %v1929, %v1928
      %v1943 = vpack.c.b16 %v1931, %v1930
      %v1944 = vpack.c.b16 %v1933, %v1932
      %v1945 = vpack.c.b16 %v1935, %v1934
      %v1946 = vpack.c.b16 %v1937, %v1936
      %v1947 = vpack.c.b16 %v1939, %v1938
      %1956 = vmatprep.subr.bf16.mxu0 0
      %1957 = vmatpush1.bf16.msra.mxu0 %v1940
      %1958 = vmatprep.subr.bf16.mxu0 0
      %1959 = vmatpush1.bf16.msra.mxu0 %v1941
      %1960 = vmatprep.subr.bf16.mxu0 0
      %1961 = vmatpush1.bf16.msra.mxu0 %v1942
      %1962 = vmatprep.subr.bf16.mxu0 0
      %1963 = vmatpush1.bf16.msra.mxu0 %v1943
      %1964 = vmatprep.subr.bf16.mxu0 0
      %1965 = vmatpush1.bf16.msra.mxu0 %v1944
      %1966 = vmatprep.subr.bf16.mxu0 0
      %1967 = vmatpush1.bf16.msra.mxu0 %v1945
      %1968 = vmatprep.subr.bf16.mxu0 0
      %1969 = vmatpush1.bf16.msra.mxu0 %v1946
      %1970 = vmatprep.subr.bf16.mxu0 0
      %1971 = vmatpush1.bf16.msra.mxu0 %v1947
      %1972 = vmatprep.subr.bf16.mxu0 0
      %1973 = vmatpush1.bf16.msra.mxu0 0
      %1974 = vmatprep.subr.bf16.mxu0 0
      %1975 = vmatpush1.bf16.msra.mxu0 0
      %1976 = vmatprep.subr.bf16.mxu0 0
      %1977 = vmatpush1.bf16.msra.mxu0 0
      %1978 = vmatprep.subr.bf16.mxu0 0
      %1979 = vmatpush1.bf16.msra.mxu0 0
      %1980 = vmatprep.subr.bf16.mxu0 0
      %1981 = vmatpush1.bf16.msra.mxu0 0
      %1982 = vmatprep.subr.bf16.mxu0 0
      %1983 = vmatpush1.bf16.msra.mxu0 0
      %1984 = vmatprep.subr.bf16.mxu0 0
      %1985 = vmatpush1.bf16.msra.mxu0 0
      %1986 = vmatprep.subr.bf16.mxu0 0
      %1987 = vmatpush1.bf16.msra.mxu0 0
      %1988 = vmatprep.mubr.bf16.mxu0 0
      %1989 = vmatmul.mubr.bf16.gmra.mrb[0].mxu0 %v1883
      %v1990 = vpop.f32.mrb[0].mxu0
      %v1991 = vadd.f32 %v1906, %v1990
      %v1992 = vpop.f32.mrb[0].mxu0
      %v1993 = vpop.f32.mrb[0].mxu0
      %v1994 = vadd.f32 %v1906, %v1993
      %v1995 = vpop.f32.mrb[0].mxu0
      %1996 = vmatprep.mubr.bf16.mxu0 0
      %1997 = vmatmul.mubr.bf16.gmra.mrb[0].mxu0 %v1884
      %v1998 = vpop.f32.mrb[0].mxu0
      %v1999 = vadd.f32 %v1906, %v1998
      %v2000 = vpop.f32.mrb[0].mxu0
      %v2001 = vpop.f32.mrb[0].mxu0
      %v2002 = vpop.f32.mrb[0].mxu0
      %2003 = vdwg.mxu0
      %v2004 = vmax.f32 %v1991, 0.0
      %v2005 = vmax.f32 %v1994, 0.0
      %v2006 = vmax.f32 %v1999, 0.0
      %v2007 = vpack.c.bf16 %v2005, %v2004
      %v2008 = vpack.c.bf16 %v2006, %v2006
      %v2009 = vld [vmem:[%s690] sm:$0xf]
      %v2010 = vld [vmem:[%s690 + $0x4] sm:$0xf]
      %v2011 = vld [vmem:[%s690 + $0x8] sm:$0xf]
      %v2012 = vld [vmem:[%s690 + $0xc] sm:$0xf]
      %v2013 = vld [vmem:[%s690 + $0x10] sm:$0xf]
      %v2014 = vld [vmem:[%s690 + $0x14] sm:$0xf]
      %v2015 = vld [vmem:[%s690 + $0x18] sm:$0xf]
      %v2016 = vld [vmem:[%s690 + $0x1c] sm:$0xf]
      %v2017 = vld [vmem:[%s690 + $0x20] sm:$0xf]
      %v2018 = vld [vmem:[%s690 + $0x24] sm:$0xf]
      %v2019 = vld [vmem:[%s690 + $0x28] sm:$0xf]
      %v2020 = vld [vmem:[%s690 + $0x2c] sm:$0xf]
      %v2021 = vld [vmem:[%s690 + $0x30] sm:$0xf]
      %v2022 = vld [vmem:[%s690 + $0x34] sm:$0xf]
      %v2023 = vld [vmem:[%s690 + $0x38] sm:$0xf]
      %v2024 = vld [vmem:[%s690 + $0x3c] sm:$0xf]
      %v2025 = vld [vmem:[%s693] sm:$0x1]
      %v2027 = vlaneseq
      %v2028 = vshrl.u32 %v2027, 7
      %v2029 = vsub.s32 0, %v2028
      %v2030 = vrot.slane %v2025, %v2029
      %v2048 = vunpack.c.l.b16 %v2009
      %v2049 = vunpack.c.l.b16 %v2010
      %v2050 = vunpack.c.l.b16 %v2011
      %v2051 = vunpack.c.l.b16 %v2012
      %v2052 = vunpack.c.l.b16 %v2013
      %v2053 = vunpack.c.l.b16 %v2014
      %v2054 = vunpack.c.l.b16 %v2015
      %v2055 = vunpack.c.l.b16 %v2016
      %v2056 = vunpack.c.l.b16 %v2017
      %v2057 = vunpack.c.l.b16 %v2018
      %v2058 = vunpack.c.l.b16 %v2019
      %v2059 = vunpack.c.l.b16 %v2020
      %v2060 = vunpack.c.l.b16 %v2021
      %v2061 = vunpack.c.l.b16 %v2022
      %v2062 = vunpack.c.l.b16 %v2023
      %v2063 = vunpack.c.l.b16 %v2024
      %v2064 = vpack.c.b16 %v2049, %v2048
      %v2065 = vpack.c.b16 %v2051, %v2050
      %v2066 = vpack.c.b16 %v2053, %v2052
      %v2067 = vpack.c.b16 %v2055, %v2054
      %v2068 = vpack.c.b16 %v2057, %v2056
      %v2069 = vpack.c.b16 %v2059, %v2058
      %v2070 = vpack.c.b16 %v2061, %v2060
      %v2071 = vpack.c.b16 %v2063, %v2062
      %2080 = vmatprep.subr.bf16.mxu0 0
      %2081 = vmatpush1.bf16.msra.mxu0 %v2064
      %2082 = vmatprep.subr.bf16.mxu0 0
      %2083 = vmatpush1.bf16.msra.mxu0 %v2065
      %2084 = vmatprep.subr.bf16.mxu0 0
      %2085 = vmatpush1.bf16.msra.mxu0 %v2066
      %2086 = vmatprep.subr.bf16.mxu0 0
      %2087 = vmatpush1.bf16.msra.mxu0 %v2067
      %2088 = vmatprep.subr.bf16.mxu0 0
      %2089 = vmatpush1.bf16.msra.mxu0 %v2068
      %2090 = vmatprep.subr.bf16.mxu0 0
      %2091 = vmatpush1.bf16.msra.mxu0 %v2069
      %2092 = vmatprep.subr.bf16.mxu0 0
      %2093 = vmatpush1.bf16.msra.mxu0 %v2070
      %2094 = vmatprep.subr.bf16.mxu0 0
      %2095 = vmatpush1.bf16.msra.mxu0 %v2071
      %2096 = vmatprep.subr.bf16.mxu0 0
      %2097 = vmatpush1.bf16.msra.mxu0 0
      %2098 = vmatprep.subr.bf16.mxu0 0
      %2099 = vmatpush1.bf16.msra.mxu0 0
      %2100 = vmatprep.subr.bf16.mxu0 0
      %2101 = vmatpush1.bf16.msra.mxu0 0
      %2102 = vmatprep.subr.bf16.mxu0 0
      %2103 = vmatpush1.bf16.msra.mxu0 0
      %2104 = vmatprep.subr.bf16.mxu0 0
      %2105 = vmatpush1.bf16.msra.mxu0 0
      %2106 = vmatprep.subr.bf16.mxu0 0
      %2107 = vmatpush1.bf16.msra.mxu0 0
      %2108 = vmatprep.subr.bf16.mxu0 0
      %2109 = vmatpush1.bf16.msra.mxu0 0
      %2110 = vmatprep.subr.bf16.mxu0 0
      %2111 = vmatpush1.bf16.msra.mxu0 0
      %2112 = vmatprep.mubr.bf16.mxu0 0
      %2113 = vmatmul.mubr.bf16.gmra.mrb[0].mxu0 %v2007
      %v2114 = vpop.f32.mrb[0].mxu0
      %v2115 = vadd.f32 %v2030, %v2114
      %v2116 = vpop.f32.mrb[0].mxu0
      %v2117 = vpop.f32.mrb[0].mxu0
      %v2118 = vadd.f32 %v2030, %v2117
      %v2119 = vpop.f32.mrb[0].mxu0
      %2120 = vmatprep.mubr.bf16.mxu0 0
      %2121 = vmatmul.mubr.bf16.gmra.mrb[0].mxu0 %v2008
      %v2122 = vpop.f32.mrb[0].mxu0
      %v2123 = vadd.f32 %v2030, %v2122
      %v2124 = vpop.f32.mrb[0].mxu0
      %v2125 = vpop.f32.mrb[0].mxu0
      %v2126 = vpop.f32.mrb[0].mxu0
      %2127 = vdwg.mxu0
      %v2128 = vadd.f32 %v1822, %v2115
      %v2129 = vadd.f32 %v1823, %v2118
      %v2130 = vadd.f32 %v1824, %v2123
      %p2131 = scmp.lt.s32.totalorder %s31, 1
      // Predicated region
      $region85: #{_lambda_.1} parent=79 // pred_check
        %p2132 = pneg %p2131
      $region86: #{_lambda_.1} parent=79 // pred_check_branch
        %2134 = sbr.rel (%p2132) target = $region88
      $region87: #{_lambda_.1} parent=79 // pred_region
        %2135 = vst [vmem:[%s698] sm:$0xff] %v2128
        %2136 = vst [vmem:[%s698 + $0x8] sm:$0xff] %v2129
        %2137 = vst [vmem:[%s698 + $0x10] sm:$0x1f] %v2130
      $region88: #{_lambda_.1} parent=79 // pred_fallthru
        _
      %p2138 = scmp.eq.s32.totalorder %s31, 1
      // Predicated region
      $region89: #{_lambda_.1} parent=79 // pred_check
        %p2139 = pneg %p2138
      $region90: #{_lambda_.1} parent=79 // pred_check_branch
        %2141 = sbr.rel (%p2139) target = $region92
      $region91: #{_lambda_.1} parent=79 // pred_region
        %v2142 = vld [vmem:[%s13] sm:$0x1]
        %v2143 = vld [vmem:[%s14] sm:$0x1]
        %2144 = vadd.xlane.f32.xlu0 %v2128
        %v2145 = vpop.xlane.xlu0 %2144
        %2146 = vadd.xlane.f32.xlu0 %v2129
        %v2147 = vpop.xlane.xlu0 %2146
        %v2148 = vsel %vm724, %v2130, 0.0
        %2149 = vadd.xlane.f32.xlu0 %v2148
        %v2150 = vpop.xlane.xlu0 %2149
        %v2151 = vmul.f32 %v2145, 0.03125
        %v2152 = vmul.f32 %v2147, 0.03125
        %v2153 = vmul.f32 %v2150, 0.03125
        %v2154 = vsub.f32 %v2128, %v2151
        %v2155 = vsub.f32 %v2129, %v2152
        %v2156 = vsub.f32 %v2130, %v2153
        %v2157 = vmul.f32 %v2154, %v719
        %v2158 = vmul.f32 %v2155, %v719
        %v2159 = vmul.f32 %v2156, %v719
        %v2160 = vmul.f32 %v2157, %v2157
        %v2161 = vmul.f32 %v2158, %v2158
        %v2162 = vmul.f32 %v2159, %v2159
        %2163 = vadd.xlane.f32.xlu0 %v2160
        %v2164 = vpop.xlane.xlu0 %2163
        %2165 = vadd.xlane.f32.xlu0 %v2161
        %v2166 = vpop.xlane.xlu0 %2165
        %v2167 = vsel %vm724, %v2162, 0.0
        %2168 = vadd.xlane.f32.xlu0 %v2167
        %v2169 = vpop.xlane.xlu0 %2168
        %v2170 = vmul.f32 %v2164, 0.03125
        %v2171 = vmul.f32 %v2166, 0.03125
        %v2172 = vmul.f32 %v2169, 0.03125
        %v2173 = vadd.f32 %v2170, 1e-05
        %v2174 = vadd.f32 %v2171, 1e-05
        %v2175 = vadd.f32 %v2172, 1e-05
        %v2176 = vrsqrt.pop %v2173
        %v2177 = vrsqrt.pop %v2174
        %v2178 = vrsqrt.pop %v2175
        %v2179 = vmul.f32 %v2157, %v2176
        %v2180 = vmul.f32 %v2158, %v2177
        %v2181 = vmul.f32 %v2159, %v2178
        %v2183 = vlaneseq
        %v2184 = vshrl.u32 %v2183, 7
        %v2185 = vsub.s32 0, %v2184
        %v2186 = vrot.slane %v2142, %v2185
        %v2188 = vmul.f32 %v2179, %v2186
        %v2189 = vmul.f32 %v2180, %v2186
        %v2190 = vmul.f32 %v2181, %v2186
        %v2192 = vlaneseq
        %v2193 = vshrl.u32 %v2192, 7
        %v2194 = vsub.s32 0, %v2193
        %v2195 = vrot.slane %v2143, %v2194
        %v2197 = vadd.f32 %v2188, %v2195
        %v2198 = vadd.f32 %v2189, %v2195
        %v2199 = vadd.f32 %v2190, %v2195
        %2200 = vst [vmem:[%s698] sm:$0xff] %v2197
        %2201 = vst [vmem:[%s698 + $0x8] sm:$0xff] %v2198
        %2202 = vst [vmem:[%s698 + $0x10] sm:$0x1f] %v2199
      $region92: #{_lambda_.1} parent=79 // pred_fallthru
        _
      %p2203 = scmp.lt.s32.totalorder %s30, 1
      %s2204 = scalar_select %p2203, %s30, 1
      %s2205 = smul.addr %s2204, 3
      %s2206 = smul.addr %s2205, 8
      %s2207 = scalar_lea.vmem %s15, %s2206
      // Predicated region
      $region93: #{_lambda_.1} parent=79 // pred_check
        %p2208 = pneg %p436
      $region94: #{_lambda_.1} parent=79 // pred_check_branch
        %2210 = sbr.rel (%p2208) target = $region96
      $region95: #{_lambda_.1} parent=79 // pred_region
        _
      $region96: #{_lambda_.1} parent=79 // pred_fallthru
        _
    $region80: #{_lambda_.1} parent=5 // pred_fallthru
      _
    %p2211 = scmp.le.s32.totalorder 2, %s21
    // Predicated region
    $region97: #{_lambda_.1} parent=5 // pred_check
      %p2212 = pneg %p2211
    $region98: #{_lambda_.1} parent=5 // pred_check_branch
      %2214 = sbr.rel (%p2212) target = $region100
    $region99: #{_lambda_.1} parent=5 // pred_region
      %s2215 = ssub.s32 %s21, 2
      // Predicated region
      $region101: #{_lambda_.1} parent=99 // pred_check
        %p2216 = pneg %p442
      $region102: #{_lambda_.1} parent=99 // pred_check_branch
        %2218 = sbr.rel (%p2216) target = $region104
      $region103: #{_lambda_.1} parent=99 // pred_region
        %p2219 = scmp.lt.s32.totalorder %s32, 1
        %s2220 = scalar_select %p2219, %s32, 1
        %s2221 = smul.addr %s2220, 3
        %s2222 = smul.addr %s2221, 8
        %s2223 = scalar_lea.vmem %s15, %s2222
      $region104: #{_lambda_.1} parent=99 // pred_fallthru
        _
    $region100: #{_lambda_.1} parent=5 // pred_fallthru
      _
  $region6: #{_lambda_.1} parent=0 // loop_footer
    %s25 = sadd.s32 1, %s21
  $region7: #{_lambda_.1} parent=0 // loop_footer_branch
    %20 = sbr.rel target = $region3
  $region8: #{_lambda_.1} parent=0 // loop_exit
    _

</llo_original>
